<compile_context>
chip_gen: v7x
topology: tpu7x:2x2x1
jax: 0.10.0
libtpu: 0.0.40
codegen_flags: <defaults>
</compile_context>

<pallas_src>
import functools
import math

import jax
import jax.numpy as jnp
from jax.experimental import pallas as pl
from jax.experimental.pallas import tpu as pltpu


def _pe_kernel(params_ref, coords_ref, out_ref):
    """One row-tile of the PE, computed directly in output-major layout.

    out[f, k] = sin(gx[f] * cx[k] + gy[f] * cy[k] + phase[f])

    where gx/gy are 2*pi-scaled Gaussian rows duplicated over the channel
    axis, phase is 0 for the sin half and pi/2 for the cos half
    (cos(x) == sin(x + pi/2)), and cx/cy are the [-1, 1] grid coordinates of
    the flattened (row-major) pixels of this tile.
    """
    gx = params_ref[:, 0:1]      # (c, 1)   2*pi * G[0, f % F]
    gy = params_ref[:, 1:2]      # (c, 1)   2*pi * G[1, f % F]
    ph = params_ref[:, 2:3]      # (c, 1)   0 (sin half) | pi/2 (cos half)
    cx = coords_ref[0:1, :]      # (1, n)   2*x_embed - 1 for this tile
    cy = coords_ref[1:2, :]      # (1, n)   2*y_embed - 1 for this tile
    # Fused projection + transcendental, stored lane-dense -- no transpose,
    # no named full-block intermediates.
    out_ref[...] = jnp.sin(gx * cx + gy * cy + ph)


def _pick_tile_h(h: int, w: int, c: int, max_block_bytes: int = 8 << 20) -> int:
    """Pick the row-tile height.

    Preference order:
      1. Largest divisor th < h with (th*w) % 128 == 0 (lane-dense stores)
         whose (c, th*w) f32 block fits `max_block_bytes` -> guarantees
         grid >= 2 (megacore sharding on v7x, write pipelining everywhere).
      2. Otherwise the largest aligned divisor that fits (may be th == h).
      3. Otherwise the smallest aligned divisor (block exceeds the soft cap;
         vmem_limit is scaled by the caller).
      4. Last resort: a single full-extent block (lane-masked stores for
         pathological h/w, slow but correct).
    """
    divisors = [th for th in range(1, h + 1) if h % th == 0]
    aligned = [th for th in divisors if (th * w) % 128 == 0]

    def fits(th: int) -> bool:
        return c * th * w * 4 <= max_block_bytes

    multi = [th for th in aligned if th < h and fits(th)]
    if multi:
        return max(multi)
    fitting = [th for th in aligned if fits(th)]
    if fitting:
        return max(fitting)
    if aligned:
        return min(aligned)
    return h


@functools.partial(jax.jit, static_argnames=("size",))
def position_embedding_random_forward(gaussian_matrix: jax.Array,
                                      size: tuple[int, int]) -> jax.Array:
    """Equivalent of PositionEmbeddingRandom.forward(size).

    Args:
      gaussian_matrix: (2, num_pos_feats) float32 buffer
        `positional_encoding_gaussian_matrix`.
      size: (h, w) of the grid.

    Returns:
      (2 * num_pos_feats, h, w) float32 positional encoding (CHW, like torch).
    """
    h, w = size
    num_pos_feats = gaussian_matrix.shape[1]
    c = 2 * num_pos_feats

    # ---- tiny wrapper-side prep (O(c) + O(h*w)) -----------------------------
    two_pi = 2.0 * math.pi
    g = gaussian_matrix.astype(jnp.float32)
    gx = two_pi * jnp.tile(g[0], 2)                                   # (c,)
    gy = two_pi * jnp.tile(g[1], 2)                                   # (c,)
    phase = jnp.concatenate(
        [jnp.zeros((num_pos_feats,), jnp.float32),
         jnp.full((num_pos_feats,), 0.5 * math.pi, jnp.float32)])     # (c,)
    params = jnp.stack([gx, gy, phase], axis=1)                       # (c, 3)

    # Flattened (row-major) [-1, 1] grid coordinates, lane-dense.
    cx1 = 2.0 * ((jnp.arange(w, dtype=jnp.float32) + 0.5) / w) - 1.0  # (w,)
    cy1 = 2.0 * ((jnp.arange(h, dtype=jnp.float32) + 0.5) / h) - 1.0  # (h,)
    cx_flat = jnp.broadcast_to(cx1[None, :], (h, w)).reshape(h * w)
    cy_flat = jnp.broadcast_to(cy1[:, None], (h, w)).reshape(h * w)
    coords = jnp.stack([cx_flat, cy_flat], axis=0)                    # (2, h*w)

    # ---- tiling --------------------------------------------------------------
    tile_h = _pick_tile_h(h, w, c)
    n = tile_h * w
    grid = (h // tile_h,)
    block_bytes = c * n * 4
    # ~2x block (double-buffered output) + ~1-2x block of fused intermediates,
    # plus headroom; capped well below v7x's 64 MiB physical VMEM for the
    # normal (<= 8 MiB block) path.
    vmem_limit = int(min(max(32 << 20, 5 * block_bytes), 100 << 20))

    cost = pl.CostEstimate(
        flops=5 * h * w * c,
        transcendentals=h * w * c,
        bytes_accessed=c * h * w * 4 + 2 * h * w * 4 + 3 * c * 4,
    )

    pe_flat = pl.pallas_call(
        _pe_kernel,
        out_shape=jax.ShapeDtypeStruct((c, h * w), jnp.float32),
        grid_spec=pltpu.PrefetchScalarGridSpec(
            num_scalar_prefetch=0,
            grid=grid,
            in_specs=[
                # Tiny (c, 3) parameter block, resident every step.
                pl.BlockSpec((c, 3), lambda i: (0, 0)),
                # This tile's slice of the flat coordinates.
                pl.BlockSpec((2, n), lambda i: (0, i)),
            ],
            out_specs=pl.BlockSpec((c, n), lambda i: (0, i)),
        ),
        compiler_params=pltpu.CompilerParams(
            dimension_semantics=("parallel",),
            vmem_limit_bytes=vmem_limit,
        ),
        cost_estimate=cost,
    )(params, coords)

    # Free contiguous reshape (no HBM transpose) -> CHW, matching torch's
    # pe.permute(2, 0, 1).
    return pe_flat.reshape(c, h, w)


def _reference_forward(gaussian_matrix: jax.Array,
                       size: tuple[int, int]) -> jax.Array:
    """Pure-JAX reference mirroring the PyTorch module exactly."""
    h, w = size
    grid = jnp.ones((h, w), dtype=jnp.float32)
    y_embed = (jnp.cumsum(grid, axis=0) - 0.5) / h
    x_embed = (jnp.cumsum(grid, axis=1) - 0.5) / w
    coords = jnp.stack([x_embed, y_embed], axis=-1)          # (h, w, 2)
    coords = 2.0 * coords - 1.0
    coords = jnp.matmul(coords, gaussian_matrix,
                        precision=jax.lax.Precision.HIGHEST)  # (h, w, F)
    coords = 2.0 * math.pi * coords
    pe = jnp.concatenate([jnp.sin(coords), jnp.cos(coords)], axis=-1)
    return jnp.transpose(pe, (2, 0, 1))


if __name__ == "__main__":
    # Deterministic "parameter" init matching __init__:
    #   scale * randn((2, num_pos_feats)), scale defaults to 1.0.
    num_pos_feats = 64
    scale = 1.0
    key = jax.random.PRNGKey(0)
    gaussian_matrix = scale * jax.random.normal(
        key, (2, num_pos_feats), dtype=jnp.float32)

    size = (16, 16)  # (h, w)

    pe = jax.block_until_ready(
        position_embedding_random_forward(gaussian_matrix, size))
    ref = jax.block_until_ready(_reference_forward(gaussian_matrix, size))

    assert pe.shape == (2 * num_pos_feats, size[0], size[1])
    assert pe.dtype == jnp.float32
    max_err = float(jnp.max(jnp.abs(pe - ref)))
    assert max_err < 1e-4, f"max abs error {max_err}"

    print("KERNEL_OK")
</pallas_src>

<mosaic_0001>
module attributes {stable_mosaic.version = 11 : i64} {
  func.func @_pe_kernel(%arg0: i32, %arg1: memref<128x3xf32, #tpu.memory_space<vmem>>, %arg2: memref<2x128xf32, #tpu.memory_space<vmem>>, %arg3: memref<128x128xf32, #tpu.memory_space<vmem>>) attributes {dimension_semantics = [#tpu.dimension_semantics<parallel>], iteration_bounds = array<i64: 2>, scalar_prefetch = 0 : i64, scratch_operands = 0 : i64, tpu.core_type = #tpu.core_type<tc>, window_params = [{pipeline_mode = #tpu.pipeline_mode<synchronous>, transform_indices = @transform_0, window_bounds = array<i64: 128, 3>}, {transform_indices = @transform_1, window_bounds = array<i64: 2, 128>}, {transform_indices = @transform_2, window_bounds = array<i64: 128, 128>}]} {
    %c0 = arith.constant 0 : index
    %c0_0 = arith.constant 0 : index
    %0 = vector.load %arg1[%c0, %c0_0] : memref<128x3xf32, #tpu.memory_space<vmem>>, vector<128x1xf32>
    %c0_1 = arith.constant 0 : index
    %c1 = arith.constant 1 : index
    %1 = vector.load %arg1[%c0_1, %c1] : memref<128x3xf32, #tpu.memory_space<vmem>>, vector<128x1xf32>
    %c0_2 = arith.constant 0 : index
    %c2 = arith.constant 2 : index
    %2 = vector.load %arg1[%c0_2, %c2] : memref<128x3xf32, #tpu.memory_space<vmem>>, vector<128x1xf32>
    %c0_3 = arith.constant 0 : index
    %c0_4 = arith.constant 0 : index
    %3 = vector.load %arg2[%c0_3, %c0_4] : memref<2x128xf32, #tpu.memory_space<vmem>>, vector<1x128xf32>
    %c1_5 = arith.constant 1 : index
    %c0_6 = arith.constant 0 : index
    %4 = vector.load %arg2[%c1_5, %c0_6] : memref<2x128xf32, #tpu.memory_space<vmem>>, vector<1x128xf32>
    %5 = vector.broadcast %0 : vector<128x1xf32> to vector<128x128xf32>
    %6 = vector.broadcast %3 : vector<1x128xf32> to vector<128x128xf32>
    %7 = arith.mulf %5, %6 : vector<128x128xf32>
    %8 = vector.broadcast %1 : vector<128x1xf32> to vector<128x128xf32>
    %9 = vector.broadcast %4 : vector<1x128xf32> to vector<128x128xf32>
    %10 = arith.mulf %8, %9 : vector<128x128xf32>
    %11 = arith.addf %7, %10 : vector<128x128xf32>
    %12 = vector.broadcast %2 : vector<128x1xf32> to vector<128x128xf32>
    %13 = arith.addf %11, %12 : vector<128x128xf32>
    %14 = math.sin %13 : vector<128x128xf32>
    %c0_7 = arith.constant 0 : index
    %c0_8 = arith.constant 0 : index
    %15 = vector.load %arg3[%c0_7, %c0_8] : memref<128x128xf32, #tpu.memory_space<vmem>>, vector<128x128xf32>
    tpu.vector_store %arg3[%c0_7, %c0_8], %14 {strides = array<i32>} : memref<128x128xf32, #tpu.memory_space<vmem>>, vector<128x128xf32>,
    return
  }
  func.func @transform_0(%arg0: i32) -> (i32, i32) {
    %c0_i32 = arith.constant 0 : i32
    %c0_i32_0 = arith.constant 0 : i32
    %c0_i32_1 = arith.constant 0 : i32
    return %c0_i32, %c0_i32_0 : i32, i32
  }
  func.func @transform_1(%arg0: i32) -> (i32, i32) {
    %c0_i32 = arith.constant 0 : i32
    %c0_i32_0 = arith.constant 0 : i32
    return %c0_i32, %arg0 : i32, i32
  }
  func.func @transform_2(%arg0: i32) -> (i32, i32) {
    %c0_i32 = arith.constant 0 : i32
    %c0_i32_0 = arith.constant 0 : i32
    return %c0_i32, %arg0 : i32, i32
  }
}

</mosaic_0001>

<llo_original>
// kernel: position_embedding_random_forward.1
$region0: #{position_embedding_random_forward.1}
  #allocation0 [shape = 'u32[]', space=smem, size = 0x4, offset = 0x4, fixed_abs, tag = 'smem constant byte address 0x4 - core index']
  #allocation1 [shape = 'u32[144,128]{1,0:T(1,128)}', space=vmem, size = 0x12000, scoped, tag = 'internal scratch']
  %s0 = inlined_call_operand.vmem [shape: f32[128,3], index: 0, kind: input, shape index: {}]
  %s1 = inlined_call_operand.vmem [shape: f32[2,256], index: 1, kind: input, shape index: {}]
  %s2 = inlined_call_operand.vmem [shape: f32[128,256], index: 2, kind: output, shape index: {}]
  %s3 = sld [smem:[#allocation0]]
  $region75: #{position_embedding_random_forward.1} parent=0
    _
  %s5 = ssub.s32 1, %s3
  %s6 = scalar_select 0, %s5, %s3
  $region1: #{position_embedding_random_forward.1} parent=0
    #allocation2 [shape = 'u8[131072]{0}', space=vmem, size = 0x20000, scoped, tag = 'output window, operand 0']
    loop: start=0, step=1, limit=4
    $region2: #{position_embedding_random_forward.1} parent=1 // loop_pre_header
      _
    $region3: #{position_embedding_random_forward.1} parent=1 // loop_header
      %s8 = sphi 0, %s12
      %p9 = scmp.ge.s32.totalorder %s8, 4
      %s16 = sphi 0, %s16
      %s18 = sphi 0, %s16
      %s19 = sphi 0, %s18
      %s33 = sphi 0, %s19
      %s39 = sphi 0, %s41
      %s42 = sphi 0, %s39
      %s43 = sphi 0, %s42
      %s59 = sphi 0, %s43
      %s65 = sphi 0, %s67
      %s68 = sphi 0, %s65
      %s69 = sphi 0, %s68
      %s85 = sphi 0, %s69
    $region4: #{position_embedding_random_forward.1} parent=1 // loop_header_branch
      %11 = sbr.rel (%p9) target = $region8
    $region5: #{position_embedding_random_forward.1} parent=1 // loop_body
      %s13 = ssub.s32 %s8, 1
      %s14 = ssub.s32 %s8, 2
      %s15 = sadd.s32 %s8, 1
      %s17 = sadd.s32 %s16, 1
      %p20 = scmp.eq.s32.totalorder %s8, 1
      %p21 = scmp.ne.s32.totalorder %s16, %s18
      %p22 = scmp.eq.s32.totalorder %s8, 0
      %p23 = por %p21, %p22
      %p24 = scmp.ne.s32.totalorder %s16, %s18
      %p25 = scmp.eq.s32.totalorder %s13, 1
      %p26 = por %p24, %p25
      %p27 = scmp.ne.s32.totalorder %s18, %s19
      %p28 = scmp.eq.s32.totalorder %s13, 0
      %p29 = por %p27, %p28
      %p30 = scmp.ne.s32.totalorder %s18, %s19
      %p31 = scmp.eq.s32.totalorder %s14, 1
      %p32 = por %p30, %p31
      %p34 = scmp.ne.s32.totalorder %s19, %s33
      %p35 = scmp.eq.s32.totalorder %s14, 0
      %p36 = por %p34, %p35
      %s37 = ssub.s32 %s8, %s15
      %p38 = scmp.eq.s32.totalorder %s37, 0
      %s40 = sadd.s32 %s39, 1
      %s41 = scalar_select %p38, %s39, %s40
      %p44 = pneg %p38
      %p45 = scmp.eq.s32.totalorder %s8, 1
      %p46 = por %p44, %p45
      %p47 = scmp.ne.s32.totalorder %s39, %s42
      %p48 = scmp.eq.s32.totalorder %s8, 0
      %p49 = por %p47, %p48
      %p50 = scmp.ne.s32.totalorder %s39, %s42
      %p51 = scmp.eq.s32.totalorder %s13, 1
      %p52 = por %p50, %p51
      %p53 = scmp.ne.s32.totalorder %s42, %s43
      %p54 = scmp.eq.s32.totalorder %s13, 0
      %p55 = por %p53, %p54
      %p56 = scmp.ne.s32.totalorder %s42, %s43
      %p57 = scmp.eq.s32.totalorder %s14, 1
      %p58 = por %p56, %p57
      %p60 = scmp.ne.s32.totalorder %s43, %s59
      %p61 = scmp.eq.s32.totalorder %s14, 0
      %p62 = por %p60, %p61
      %s63 = ssub.s32 %s8, %s15
      %p64 = scmp.eq.s32.totalorder %s63, 0
      %s66 = sadd.s32 %s65, 1
      %s67 = scalar_select %p64, %s65, %s66
      %p70 = pneg %p64
      %p71 = scmp.eq.s32.totalorder %s8, 1
      %p72 = por %p70, %p71
      %p73 = scmp.ne.s32.totalorder %s65, %s68
      %p74 = scmp.eq.s32.totalorder %s8, 0
      %p75 = por %p73, %p74
      %p76 = scmp.ne.s32.totalorder %s65, %s68
      %p77 = scmp.eq.s32.totalorder %s13, 1
      %p78 = por %p76, %p77
      %p79 = scmp.ne.s32.totalorder %s68, %s69
      %p80 = scmp.eq.s32.totalorder %s13, 0
      %p81 = por %p79, %p80
      %p82 = scmp.ne.s32.totalorder %s68, %s69
      %p83 = scmp.eq.s32.totalorder %s14, 1
      %p84 = por %p82, %p83
      %p86 = scmp.ne.s32.totalorder %s69, %s85
      %p87 = scmp.eq.s32.totalorder %s14, 0
      %p88 = por %p86, %p87
      %p89 = scmp.le.s32.totalorder 1, %s8
      %p90 = scmp.lt.s32.totalorder %s8, 3
      %p91 = pnand %p89, %p90
      %p92 = pneg %p91
      // Predicated region
      $region9: #{position_embedding_random_forward.1} parent=5 // pred_check
        _
      $region10: #{position_embedding_random_forward.1} parent=5 // pred_check_branch
        %94 = sbr.rel (%p91) target = $region12
      $region11: #{position_embedding_random_forward.1} parent=5 // pred_region
        %s95 = ssub.s32 %s8, 1
        // Predicated region
        $region13: #{position_embedding_random_forward.1} parent=11 // pred_check
          %p96 = pneg %p29
        $region14: #{position_embedding_random_forward.1} parent=11 // pred_check_branch
          %98 = sbr.rel (%p96) target = $region16
        $region15: #{position_embedding_random_forward.1} parent=11 // pred_region
          _
        $region16: #{position_embedding_random_forward.1} parent=11 // pred_fallthru
          _
      $region12: #{position_embedding_random_forward.1} parent=5 // pred_fallthru
        _
      %p99 = scmp.lt.s32.totalorder %s8, 2
      // Predicated region
      $region17: #{position_embedding_random_forward.1} parent=5 // pred_check
        %p100 = pneg %p99
      $region18: #{position_embedding_random_forward.1} parent=5 // pred_check_branch
        %102 = sbr.rel (%p100) target = $region20
      $region19: #{position_embedding_random_forward.1} parent=5 // pred_region
        // Predicated region
        $region21: #{position_embedding_random_forward.1} parent=19 // pred_check
          %p103 = pneg %p49
        $region22: #{position_embedding_random_forward.1} parent=19 // pred_check_branch
          %105 = sbr.rel (%p103) target = $region24
        $region23: #{position_embedding_random_forward.1} parent=19 // pred_region
          %p106 = scmp.lt.s32.totalorder %s8, 1
          %s107 = scalar_select %p106, %s8, 1
          %s108 = smul.addr %s107, 2
          %s109 = scalar_lea.vmem %s1, %s108
        $region24: #{position_embedding_random_forward.1} parent=19 // pred_fallthru
          _
      $region20: #{position_embedding_random_forward.1} parent=5 // pred_fallthru
        _
      %p110 = scmp.le.s32.totalorder 1, %s8
      %p111 = scmp.lt.s32.totalorder %s8, 3
      %p112 = pnand %p110, %p111
      %p113 = pneg %p112
      // Predicated region
      $region25: #{position_embedding_random_forward.1} parent=5 // pred_check
        _
      $region26: #{position_embedding_random_forward.1} parent=5 // pred_check_branch
        %115 = sbr.rel (%p112) target = $region28
      $region27: #{position_embedding_random_forward.1} parent=5 // pred_region
        %s116 = ssub.s32 %s8, 1
        %p117 = pneg %p29
        %p118 = pneg %p26
        %p119 = scmp.lt.s32.totalorder %s13, 1
        %s120 = scalar_select %p119, %s13, 1
        %s121 = smul.addr %s120, 2
        %s122 = scalar_lea.vmem %s1, %s121
        %p123 = pneg %p55
        %p124 = pneg %p52
        %p125 = pneg %p81
        %p126 = pneg %p78
        %s127 = sand.u32 %s68, 1
        %s128 = sand.u32 %s68, 1
        %s129 = smul.addr %s128, 128
        %s130 = scalar_lea.vmem [#allocation2], %s129
        %p131 = scmp.lt.s32.totalorder %s13, 1
        %s132 = scalar_select %p131, %s13, 1
        %s133 = smul.addr %s132, 2
        %s134 = scalar_lea.vmem %s1, %s133
        %v135 = vld [vmem:[%s0] sm:$0xff]
        %v136 = vld [vmem:[%s0 + $0x8] sm:$0xff]
        %v137 = vld [vmem:[%s0 + $0x10] sm:$0xff]
        %v138 = vld [vmem:[%s0 + $0x18] sm:$0xff]
        %v139 = vld [vmem:[%s0 + $0x20] sm:$0xff]
        %v140 = vld [vmem:[%s0 + $0x28] sm:$0xff]
        %v141 = vld [vmem:[%s0 + $0x30] sm:$0xff]
        %v142 = vld [vmem:[%s0 + $0x38] sm:$0xff]
        %v143 = vld [vmem:[%s0 + $0x40] sm:$0xff]
        %v144 = vld [vmem:[%s0 + $0x48] sm:$0xff]
        %v145 = vld [vmem:[%s0 + $0x50] sm:$0xff]
        %v146 = vld [vmem:[%s0 + $0x58] sm:$0xff]
        %v147 = vld [vmem:[%s0 + $0x60] sm:$0xff]
        %v148 = vld [vmem:[%s0 + $0x68] sm:$0xff]
        %v149 = vld [vmem:[%s0 + $0x70] sm:$0xff]
        %v150 = vld [vmem:[%s0 + $0x78] sm:$0xff]
        %v151 = vld [vmem:[%s134] sm:$0x1]
        %v152 = vld [vmem:[%s134 + $0x1] sm:$0x1]
        %154 = vset.pattern.permute.xlu0 0
        %155 = vperm.xlu0 %154, %v135
        %v156 = vpop.permute.xlu0 %155
        %159 = vset.pattern.permute.xlu0 0
        %160 = vperm.xlu0 %159, %v136
        %v161 = vpop.permute.xlu0 %160
        %164 = vset.pattern.permute.xlu0 0
        %165 = vperm.xlu0 %164, %v137
        %v166 = vpop.permute.xlu0 %165
        %169 = vset.pattern.permute.xlu0 0
        %170 = vperm.xlu0 %169, %v138
        %v171 = vpop.permute.xlu0 %170
        %174 = vset.pattern.permute.xlu0 0
        %175 = vperm.xlu0 %174, %v139
        %v176 = vpop.permute.xlu0 %175
        %179 = vset.pattern.permute.xlu0 0
        %180 = vperm.xlu0 %179, %v140
        %v181 = vpop.permute.xlu0 %180
        %184 = vset.pattern.permute.xlu0 0
        %185 = vperm.xlu0 %184, %v141
        %v186 = vpop.permute.xlu0 %185
        %189 = vset.pattern.permute.xlu0 0
        %190 = vperm.xlu0 %189, %v142
        %v191 = vpop.permute.xlu0 %190
        %194 = vset.pattern.permute.xlu0 0
        %195 = vperm.xlu0 %194, %v143
        %v196 = vpop.permute.xlu0 %195
        %199 = vset.pattern.permute.xlu0 0
        %200 = vperm.xlu0 %199, %v144
        %v201 = vpop.permute.xlu0 %200
        %204 = vset.pattern.permute.xlu0 0
        %205 = vperm.xlu0 %204, %v145
        %v206 = vpop.permute.xlu0 %205
        %209 = vset.pattern.permute.xlu0 0
        %210 = vperm.xlu0 %209, %v146
        %v211 = vpop.permute.xlu0 %210
        %214 = vset.pattern.permute.xlu0 0
        %215 = vperm.xlu0 %214, %v147
        %v216 = vpop.permute.xlu0 %215
        %219 = vset.pattern.permute.xlu0 0
        %220 = vperm.xlu0 %219, %v148
        %v221 = vpop.permute.xlu0 %220
        %224 = vset.pattern.permute.xlu0 0
        %225 = vperm.xlu0 %224, %v149
        %v226 = vpop.permute.xlu0 %225
        %229 = vset.pattern.permute.xlu0 0
        %230 = vperm.xlu0 %229, %v150
        %v231 = vpop.permute.xlu0 %230
        %v233 = vlaneseq
        %v234 = vshrl.u32 %v233, 7
        %v235 = vsub.s32 0, %v234
        %v236 = vrot.slane %v151, %v235
        %v237 = vmul.f32 %v156, %v236
        %v238 = vmul.f32 %v161, %v236
        %v239 = vmul.f32 %v166, %v236
        %v240 = vmul.f32 %v171, %v236
        %v241 = vmul.f32 %v176, %v236
        %v242 = vmul.f32 %v181, %v236
        %v243 = vmul.f32 %v186, %v236
        %v244 = vmul.f32 %v191, %v236
        %v245 = vmul.f32 %v196, %v236
        %v246 = vmul.f32 %v201, %v236
        %v247 = vmul.f32 %v206, %v236
        %v248 = vmul.f32 %v211, %v236
        %v249 = vmul.f32 %v216, %v236
        %v250 = vmul.f32 %v221, %v236
        %v251 = vmul.f32 %v226, %v236
        %v252 = vmul.f32 %v231, %v236
        %253 = vset.pattern.permute.xlu0 1
        %254 = vperm.xlu0 %253, %v135
        %v255 = vpop.permute.xlu0 %254
        %257 = vset.pattern.permute.xlu0 1
        %258 = vperm.xlu0 %257, %v136
        %v259 = vpop.permute.xlu0 %258
        %261 = vset.pattern.permute.xlu0 1
        %262 = vperm.xlu0 %261, %v137
        %v263 = vpop.permute.xlu0 %262
        %265 = vset.pattern.permute.xlu0 1
        %266 = vperm.xlu0 %265, %v138
        %v267 = vpop.permute.xlu0 %266
        %269 = vset.pattern.permute.xlu0 1
        %270 = vperm.xlu0 %269, %v139
        %v271 = vpop.permute.xlu0 %270
        %273 = vset.pattern.permute.xlu0 1
        %274 = vperm.xlu0 %273, %v140
        %v275 = vpop.permute.xlu0 %274
        %277 = vset.pattern.permute.xlu0 1
        %278 = vperm.xlu0 %277, %v141
        %v279 = vpop.permute.xlu0 %278
        %281 = vset.pattern.permute.xlu0 1
        %282 = vperm.xlu0 %281, %v142
        %v283 = vpop.permute.xlu0 %282
        %285 = vset.pattern.permute.xlu0 1
        %286 = vperm.xlu0 %285, %v143
        %v287 = vpop.permute.xlu0 %286
        %289 = vset.pattern.permute.xlu0 1
        %290 = vperm.xlu0 %289, %v144
        %v291 = vpop.permute.xlu0 %290
        %293 = vset.pattern.permute.xlu0 1
        %294 = vperm.xlu0 %293, %v145
        %v295 = vpop.permute.xlu0 %294
        %297 = vset.pattern.permute.xlu0 1
        %298 = vperm.xlu0 %297, %v146
        %v299 = vpop.permute.xlu0 %298
        %301 = vset.pattern.permute.xlu0 1
        %302 = vperm.xlu0 %301, %v147
        %v303 = vpop.permute.xlu0 %302
        %305 = vset.pattern.permute.xlu0 1
        %306 = vperm.xlu0 %305, %v148
        %v307 = vpop.permute.xlu0 %306
        %309 = vset.pattern.permute.xlu0 1
        %310 = vperm.xlu0 %309, %v149
        %v311 = vpop.permute.xlu0 %310
        %313 = vset.pattern.permute.xlu0 1
        %314 = vperm.xlu0 %313, %v150
        %v315 = vpop.permute.xlu0 %314
        %v317 = vlaneseq
        %v318 = vshrl.u32 %v317, 7
        %v319 = vsub.s32 0, %v318
        %v320 = vrot.slane %v152, %v319
        %v321 = vmul.f32 %v255, %v320
        %v322 = vmul.f32 %v259, %v320
        %v323 = vmul.f32 %v263, %v320
        %v324 = vmul.f32 %v267, %v320
        %v325 = vmul.f32 %v271, %v320
        %v326 = vmul.f32 %v275, %v320
        %v327 = vmul.f32 %v279, %v320
        %v328 = vmul.f32 %v283, %v320
        %v329 = vmul.f32 %v287, %v320
        %v330 = vmul.f32 %v291, %v320
        %v331 = vmul.f32 %v295, %v320
        %v332 = vmul.f32 %v299, %v320
        %v333 = vmul.f32 %v303, %v320
        %v334 = vmul.f32 %v307, %v320
        %v335 = vmul.f32 %v311, %v320
        %v336 = vmul.f32 %v315, %v320
        %v337 = vadd.f32 %v237, %v321
        %v338 = vadd.f32 %v238, %v322
        %v339 = vadd.f32 %v239, %v323
        %v340 = vadd.f32 %v240, %v324
        %v341 = vadd.f32 %v241, %v325
        %v342 = vadd.f32 %v242, %v326
        %v343 = vadd.f32 %v243, %v327
        %v344 = vadd.f32 %v244, %v328
        %v345 = vadd.f32 %v245, %v329
        %v346 = vadd.f32 %v246, %v330
        %v347 = vadd.f32 %v247, %v331
        %v348 = vadd.f32 %v248, %v332
        %v349 = vadd.f32 %v249, %v333
        %v350 = vadd.f32 %v250, %v334
        %v351 = vadd.f32 %v251, %v335
        %v352 = vadd.f32 %v252, %v336
        %353 = vset.pattern.permute.xlu0 2
        %354 = vperm.xlu0 %353, %v135
        %v355 = vpop.permute.xlu0 %354
        %357 = vset.pattern.permute.xlu0 2
        %358 = vperm.xlu0 %357, %v136
        %v359 = vpop.permute.xlu0 %358
        %361 = vset.pattern.permute.xlu0 2
        %362 = vperm.xlu0 %361, %v137
        %v363 = vpop.permute.xlu0 %362
        %365 = vset.pattern.permute.xlu0 2
        %366 = vperm.xlu0 %365, %v138
        %v367 = vpop.permute.xlu0 %366
        %369 = vset.pattern.permute.xlu0 2
        %370 = vperm.xlu0 %369, %v139
        %v371 = vpop.permute.xlu0 %370
        %373 = vset.pattern.permute.xlu0 2
        %374 = vperm.xlu0 %373, %v140
        %v375 = vpop.permute.xlu0 %374
        %377 = vset.pattern.permute.xlu0 2
        %378 = vperm.xlu0 %377, %v141
        %v379 = vpop.permute.xlu0 %378
        %381 = vset.pattern.permute.xlu0 2
        %382 = vperm.xlu0 %381, %v142
        %v383 = vpop.permute.xlu0 %382
        %385 = vset.pattern.permute.xlu0 2
        %386 = vperm.xlu0 %385, %v143
        %v387 = vpop.permute.xlu0 %386
        %389 = vset.pattern.permute.xlu0 2
        %390 = vperm.xlu0 %389, %v144
        %v391 = vpop.permute.xlu0 %390
        %393 = vset.pattern.permute.xlu0 2
        %394 = vperm.xlu0 %393, %v145
        %v395 = vpop.permute.xlu0 %394
        %397 = vset.pattern.permute.xlu0 2
        %398 = vperm.xlu0 %397, %v146
        %v399 = vpop.permute.xlu0 %398
        %401 = vset.pattern.permute.xlu0 2
        %402 = vperm.xlu0 %401, %v147
        %v403 = vpop.permute.xlu0 %402
        %405 = vset.pattern.permute.xlu0 2
        %406 = vperm.xlu0 %405, %v148
        %v407 = vpop.permute.xlu0 %406
        %409 = vset.pattern.permute.xlu0 2
        %410 = vperm.xlu0 %409, %v149
        %v411 = vpop.permute.xlu0 %410
        %413 = vset.pattern.permute.xlu0 2
        %414 = vperm.xlu0 %413, %v150
        %v415 = vpop.permute.xlu0 %414
        %v417 = vadd.f32 %v337, %v355
        %v418 = vadd.f32 %v338, %v359
        %v419 = vadd.f32 %v339, %v363
        %v420 = vadd.f32 %v340, %v367
        %v421 = vadd.f32 %v341, %v371
        %v422 = vadd.f32 %v342, %v375
        %v423 = vadd.f32 %v343, %v379
        %v424 = vadd.f32 %v344, %v383
        %v425 = vadd.f32 %v345, %v387
        %v426 = vadd.f32 %v346, %v391
        %v427 = vadd.f32 %v347, %v395
        %v428 = vadd.f32 %v348, %v399
        %v429 = vadd.f32 %v349, %v403
        %v430 = vadd.f32 %v350, %v407
        %v431 = vadd.f32 %v351, %v411
        %v432 = vadd.f32 %v352, %v415
        %v433 = vand.u32 2147483647, %v417
        %vm434 = vcmp.le.f32.partialorder %v433, 0.7853982
        %vm435 = vcmp.lt.s32.totalorder %v417, 0
        %v436 = vand.u32 %v417, 2139095040
        %v437 = vshrl.u32 %v436, 23
        %v438 = vsub.s32 %v437, 127
        %v439 = vand.u32 2147483647, %v417
        %v440 = vand.u32 %v439, 8388607
        %v441 = vor.u32 %v440, 8388608
        %v442 = vsub.s32 0, %v441
        %v443 = vadd.s32 %v438, 1
        %vm444 = vcmp.gt.s32.totalorder %v443, 0
        %v445 = vsel %vm444, %v443, 0
        %v446 = vshrl.u32 %v445, 5
        %v447 = vand.u32 %v445, 31
        %v448 = vsub.s32 32, %v447
        %v449 = vshrl.u32 683565275, %v448
        %v450 = vshll.u32 683565275, %v447
        %v451 = vshrl.u32 2475754826, %v448
        %v452 = vor.u32 %v450, %v451
        %v453 = vshll.u32 2475754826, %v447
        %v454 = vshrl.u32 2131351028, %v448
        %v455 = vor.u32 %v453, %v454
        %v456 = vshll.u32 2131351028, %v447
        %v457 = vshrl.u32 2102212464, %v448
        %v458 = vor.u32 %v456, %v457
        %v459 = vshll.u32 2102212464, %v447
        %v460 = vshrl.u32 920167782, %v448
        %v461 = vor.u32 %v459, %v460
        %v462 = vshll.u32 920167782, %v447
        %v463 = vshrl.u32 1326507024, %v448
        %v464 = vor.u32 %v462, %v463
        %vm465 = vcmp.lt.s32.totalorder %v446, 1
        %vm466 = vcmp.lt.s32.totalorder %v446, 2
        %vm467 = vcmp.lt.s32.totalorder %v446, 3
        %vm468 = vcmp.lt.s32.totalorder %v446, 4
        %v469 = vsel %vm465, %v449, %v452
        %v470 = vsel %vm468, %v458, 2102212464
        %v471 = vsel %vm467, %v455, %v470
        %v472 = vsel %vm466, %v469, %v471
        %v473 = vsel %vm465, %v452, %v455
        %v474 = vsel %vm468, %v461, 920167782
        %v475 = vsel %vm467, %v458, %v474
        %v476 = vsel %vm466, %v473, %v475
        %v477 = vsel %vm465, %v455, %v458
        %v478 = vsel %vm468, %v464, 1326507024
        %v479 = vsel %vm467, %v461, %v478
        %v480 = vsel %vm466, %v477, %v479
        %v481 = vshll.u32 %v441, 8
        %v482 = vmul.u32.u64.compose %v481, %v480
        %v483 = vextract.low.u32 %v482
        %v484 = vextract.high.u32 %v482
        %v485 = vmul.u32.u64.compose %v481, %v476
        %v486 = vextract.low.u32 %v485
        %v487 = vextract.high.u32 %v485
        %v488 = vmul.u32 %v481, %v472
        %v489 = vadd.s32 %v484, %v486
        %vm490 = vc.u32 %v484, %v486
        %v491 = vadd.s32 %v487, 1
        %v492 = vsel %vm490, %v491, %v487
        %v493 = vadd.s32 %v488, %v492
        %v494 = vadd.s32 %v493, 536870912
        %v495 = vshrl.u32 %v494, 30
        %v496 = vshll.u32 %v495, 30
        %v497 = vsub.s32 %v493, %v496
        %vm498 = vcmp.lt.s32.totalorder %v497, 0
        %v499 = vsub.s32 0, %v497
        %v500 = vsel %vm498, %v499, %v497
        %v501 = vclz %v500
        %v502 = vsub.s32 %v501, 2
        %vm503 = vcmp.gt.s32.totalorder 0, %v502
        %v504 = vsel %vm503, 0, %v502
        %v505 = vsub.s32 32, %v504
        %v506 = vshll.u32 %v497, %v504
        %v507 = vshrl.u32 %v489, %v505
        %v508 = vor.u32 %v506, %v507
        %v509 = vsub.s32 4294967266, %v504
        %v510 = vadd.s32 %v509, 127
        %v511 = vshll.u32 %v510, 23
        %v512 = vor.u32 4788187, %v511
        %v513 = vand.u32 2147483647, %v512
        %v515 = vcvt.s32.f32 %v508
        %v516 = vmul.f32 %v515, %v513
        %v517 = vxor.u32 %v516, 2147483648
        %v518 = vsel %vm435, %v517, %v516
        %v519 = vsub.s32 4, %v495
        %v520 = vsel %vm435, %v519, %v495
        %v521 = vsel %vm434, %v417, %v518
        %v522 = vsel %vm434, 0, %v520
        %v523 = vcosq.f32.pop %v521
        %v524 = vsinq.f32.pop %v521
        %vm525 = vweird.f32 %v417
        %v526 = vadd.s32 %v522, 3
        %v527 = vand.u32 %v526, 3
        %vm528 = vcmp.lt.s32.totalorder %v527, 2
        %vm529 = vcmp.eq.s32.totalorder %v527, 0
        %v530 = vxor.u32 %v524, 2147483648
        %v531 = vsel %vm529, %v523, %v530
        %vm532 = vcmp.eq.s32.totalorder %v527, 2
        %v533 = vxor.u32 %v523, 2147483648
        %v534 = vsel %vm532, %v533, %v524
        %v535 = vsel %vm528, %v531, %v534
        %v536 = vsel %vm525, nan, %v535
        %v537 = vand.u32 2147483647, %v418
        %vm538 = vcmp.le.f32.partialorder %v537, 0.7853982
        %vm539 = vcmp.lt.s32.totalorder %v418, 0
        %v540 = vand.u32 %v418, 2139095040
        %v541 = vshrl.u32 %v540, 23
        %v542 = vsub.s32 %v541, 127
        %v543 = vand.u32 2147483647, %v418
        %v544 = vand.u32 %v543, 8388607
        %v545 = vor.u32 %v544, 8388608
        %v546 = vsub.s32 0, %v545
        %v547 = vadd.s32 %v542, 1
        %vm548 = vcmp.gt.s32.totalorder %v547, 0
        %v549 = vsel %vm548, %v547, 0
        %v550 = vshrl.u32 %v549, 5
        %v551 = vand.u32 %v549, 31
        %v552 = vsub.s32 32, %v551
        %v553 = vshrl.u32 683565275, %v552
        %v554 = vshll.u32 683565275, %v551
        %v555 = vshrl.u32 2475754826, %v552
        %v556 = vor.u32 %v554, %v555
        %v557 = vshll.u32 2475754826, %v551
        %v558 = vshrl.u32 2131351028, %v552
        %v559 = vor.u32 %v557, %v558
        %v560 = vshll.u32 2131351028, %v551
        %v561 = vshrl.u32 2102212464, %v552
        %v562 = vor.u32 %v560, %v561
        %v563 = vshll.u32 2102212464, %v551
        %v564 = vshrl.u32 920167782, %v552
        %v565 = vor.u32 %v563, %v564
        %v566 = vshll.u32 920167782, %v551
        %v567 = vshrl.u32 1326507024, %v552
        %v568 = vor.u32 %v566, %v567
        %vm569 = vcmp.lt.s32.totalorder %v550, 1
        %vm570 = vcmp.lt.s32.totalorder %v550, 2
        %vm571 = vcmp.lt.s32.totalorder %v550, 3
        %vm572 = vcmp.lt.s32.totalorder %v550, 4
        %v573 = vsel %vm569, %v553, %v556
        %v574 = vsel %vm572, %v562, 2102212464
        %v575 = vsel %vm571, %v559, %v574
        %v576 = vsel %vm570, %v573, %v575
        %v577 = vsel %vm569, %v556, %v559
        %v578 = vsel %vm572, %v565, 920167782
        %v579 = vsel %vm571, %v562, %v578
        %v580 = vsel %vm570, %v577, %v579
        %v581 = vsel %vm569, %v559, %v562
        %v582 = vsel %vm572, %v568, 1326507024
        %v583 = vsel %vm571, %v565, %v582
        %v584 = vsel %vm570, %v581, %v583
        %v585 = vshll.u32 %v545, 8
        %v586 = vmul.u32.u64.compose %v585, %v584
        %v587 = vextract.low.u32 %v586
        %v588 = vextract.high.u32 %v586
        %v589 = vmul.u32.u64.compose %v585, %v580
        %v590 = vextract.low.u32 %v589
        %v591 = vextract.high.u32 %v589
        %v592 = vmul.u32 %v585, %v576
        %v593 = vadd.s32 %v588, %v590
        %vm594 = vc.u32 %v588, %v590
        %v595 = vadd.s32 %v591, 1
        %v596 = vsel %vm594, %v595, %v591
        %v597 = vadd.s32 %v592, %v596
        %v598 = vadd.s32 %v597, 536870912
        %v599 = vshrl.u32 %v598, 30
        %v600 = vshll.u32 %v599, 30
        %v601 = vsub.s32 %v597, %v600
        %vm602 = vcmp.lt.s32.totalorder %v601, 0
        %v603 = vsub.s32 0, %v601
        %v604 = vsel %vm602, %v603, %v601
        %v605 = vclz %v604
        %v606 = vsub.s32 %v605, 2
        %vm607 = vcmp.gt.s32.totalorder 0, %v606
        %v608 = vsel %vm607, 0, %v606
        %v609 = vsub.s32 32, %v608
        %v610 = vshll.u32 %v601, %v608
        %v611 = vshrl.u32 %v593, %v609
        %v612 = vor.u32 %v610, %v611
        %v613 = vsub.s32 4294967266, %v608
        %v614 = vadd.s32 %v613, 127
        %v615 = vshll.u32 %v614, 23
        %v616 = vor.u32 4788187, %v615
        %v617 = vand.u32 2147483647, %v616
        %v619 = vcvt.s32.f32 %v612
        %v620 = vmul.f32 %v619, %v617
        %v621 = vxor.u32 %v620, 2147483648
        %v622 = vsel %vm539, %v621, %v620
        %v623 = vsub.s32 4, %v599
        %v624 = vsel %vm539, %v623, %v599
        %v625 = vsel %vm538, %v418, %v622
        %v626 = vsel %vm538, 0, %v624
        %v627 = vcosq.f32.pop %v625
        %v628 = vsinq.f32.pop %v625
        %vm629 = vweird.f32 %v418
        %v630 = vadd.s32 %v626, 3
        %v631 = vand.u32 %v630, 3
        %vm632 = vcmp.lt.s32.totalorder %v631, 2
        %vm633 = vcmp.eq.s32.totalorder %v631, 0
        %v634 = vxor.u32 %v628, 2147483648
        %v635 = vsel %vm633, %v627, %v634
        %vm636 = vcmp.eq.s32.totalorder %v631, 2
        %v637 = vxor.u32 %v627, 2147483648
        %v638 = vsel %vm636, %v637, %v628
        %v639 = vsel %vm632, %v635, %v638
        %v640 = vsel %vm629, nan, %v639
        %v641 = vand.u32 2147483647, %v419
        %vm642 = vcmp.le.f32.partialorder %v641, 0.7853982
        %vm643 = vcmp.lt.s32.totalorder %v419, 0
        %v644 = vand.u32 %v419, 2139095040
        %v645 = vshrl.u32 %v644, 23
        %v646 = vsub.s32 %v645, 127
        %v647 = vand.u32 2147483647, %v419
        %v648 = vand.u32 %v647, 8388607
        %v649 = vor.u32 %v648, 8388608
        %v650 = vsub.s32 0, %v649
        %v651 = vadd.s32 %v646, 1
        %vm652 = vcmp.gt.s32.totalorder %v651, 0
        %v653 = vsel %vm652, %v651, 0
        %v654 = vshrl.u32 %v653, 5
        %v655 = vand.u32 %v653, 31
        %v656 = vsub.s32 32, %v655
        %v657 = vshrl.u32 683565275, %v656
        %v658 = vshll.u32 683565275, %v655
        %v659 = vshrl.u32 2475754826, %v656
        %v660 = vor.u32 %v658, %v659
        %v661 = vshll.u32 2475754826, %v655
        %v662 = vshrl.u32 2131351028, %v656
        %v663 = vor.u32 %v661, %v662
        %v664 = vshll.u32 2131351028, %v655
        %v665 = vshrl.u32 2102212464, %v656
        %v666 = vor.u32 %v664, %v665
        %v667 = vshll.u32 2102212464, %v655
        %v668 = vshrl.u32 920167782, %v656
        %v669 = vor.u32 %v667, %v668
        %v670 = vshll.u32 920167782, %v655
        %v671 = vshrl.u32 1326507024, %v656
        %v672 = vor.u32 %v670, %v671
        %vm673 = vcmp.lt.s32.totalorder %v654, 1
        %vm674 = vcmp.lt.s32.totalorder %v654, 2
        %vm675 = vcmp.lt.s32.totalorder %v654, 3
        %vm676 = vcmp.lt.s32.totalorder %v654, 4
        %v677 = vsel %vm673, %v657, %v660
        %v678 = vsel %vm676, %v666, 2102212464
        %v679 = vsel %vm675, %v663, %v678
        %v680 = vsel %vm674, %v677, %v679
        %v681 = vsel %vm673, %v660, %v663
        %v682 = vsel %vm676, %v669, 920167782
        %v683 = vsel %vm675, %v666, %v682
        %v684 = vsel %vm674, %v681, %v683
        %v685 = vsel %vm673, %v663, %v666
        %v686 = vsel %vm676, %v672, 1326507024
        %v687 = vsel %vm675, %v669, %v686
        %v688 = vsel %vm674, %v685, %v687
        %v689 = vshll.u32 %v649, 8
        %v690 = vmul.u32.u64.compose %v689, %v688
        %v691 = vextract.low.u32 %v690
        %v692 = vextract.high.u32 %v690
        %v693 = vmul.u32.u64.compose %v689, %v684
        %v694 = vextract.low.u32 %v693
        %v695 = vextract.high.u32 %v693
        %v696 = vmul.u32 %v689, %v680
        %v697 = vadd.s32 %v692, %v694
        %vm698 = vc.u32 %v692, %v694
        %v699 = vadd.s32 %v695, 1
        %v700 = vsel %vm698, %v699, %v695
        %v701 = vadd.s32 %v696, %v700
        %v702 = vadd.s32 %v701, 536870912
        %v703 = vshrl.u32 %v702, 30
        %v704 = vshll.u32 %v703, 30
        %v705 = vsub.s32 %v701, %v704
        %vm706 = vcmp.lt.s32.totalorder %v705, 0
        %v707 = vsub.s32 0, %v705
        %v708 = vsel %vm706, %v707, %v705
        %v709 = vclz %v708
        %v710 = vsub.s32 %v709, 2
        %vm711 = vcmp.gt.s32.totalorder 0, %v710
        %v712 = vsel %vm711, 0, %v710
        %v713 = vsub.s32 32, %v712
        %v714 = vshll.u32 %v705, %v712
        %v715 = vshrl.u32 %v697, %v713
        %v716 = vor.u32 %v714, %v715
        %v717 = vsub.s32 4294967266, %v712
        %v718 = vadd.s32 %v717, 127
        %v719 = vshll.u32 %v718, 23
        %v720 = vor.u32 4788187, %v719
        %v721 = vand.u32 2147483647, %v720
        %v723 = vcvt.s32.f32 %v716
        %v724 = vmul.f32 %v723, %v721
        %v725 = vxor.u32 %v724, 2147483648
        %v726 = vsel %vm643, %v725, %v724
        %v727 = vsub.s32 4, %v703
        %v728 = vsel %vm643, %v727, %v703
        %v729 = vsel %vm642, %v419, %v726
        %v730 = vsel %vm642, 0, %v728
        %v731 = vcosq.f32.pop %v729
        %v732 = vsinq.f32.pop %v729
        %vm733 = vweird.f32 %v419
        %v734 = vadd.s32 %v730, 3
        %v735 = vand.u32 %v734, 3
        %vm736 = vcmp.lt.s32.totalorder %v735, 2
        %vm737 = vcmp.eq.s32.totalorder %v735, 0
        %v738 = vxor.u32 %v732, 2147483648
        %v739 = vsel %vm737, %v731, %v738
        %vm740 = vcmp.eq.s32.totalorder %v735, 2
        %v741 = vxor.u32 %v731, 2147483648
        %v742 = vsel %vm740, %v741, %v732
        %v743 = vsel %vm736, %v739, %v742
        %v744 = vsel %vm733, nan, %v743
        %v745 = vand.u32 2147483647, %v420
        %vm746 = vcmp.le.f32.partialorder %v745, 0.7853982
        %vm747 = vcmp.lt.s32.totalorder %v420, 0
        %v748 = vand.u32 %v420, 2139095040
        %v749 = vshrl.u32 %v748, 23
        %v750 = vsub.s32 %v749, 127
        %v751 = vand.u32 2147483647, %v420
        %v752 = vand.u32 %v751, 8388607
        %v753 = vor.u32 %v752, 8388608
        %v754 = vsub.s32 0, %v753
        %v755 = vadd.s32 %v750, 1
        %vm756 = vcmp.gt.s32.totalorder %v755, 0
        %v757 = vsel %vm756, %v755, 0
        %v758 = vshrl.u32 %v757, 5
        %v759 = vand.u32 %v757, 31
        %v760 = vsub.s32 32, %v759
        %v761 = vshrl.u32 683565275, %v760
        %v762 = vshll.u32 683565275, %v759
        %v763 = vshrl.u32 2475754826, %v760
        %v764 = vor.u32 %v762, %v763
        %v765 = vshll.u32 2475754826, %v759
        %v766 = vshrl.u32 2131351028, %v760
        %v767 = vor.u32 %v765, %v766
        %v768 = vshll.u32 2131351028, %v759
        %v769 = vshrl.u32 2102212464, %v760
        %v770 = vor.u32 %v768, %v769
        %v771 = vshll.u32 2102212464, %v759
        %v772 = vshrl.u32 920167782, %v760
        %v773 = vor.u32 %v771, %v772
        %v774 = vshll.u32 920167782, %v759
        %v775 = vshrl.u32 1326507024, %v760
        %v776 = vor.u32 %v774, %v775
        %vm777 = vcmp.lt.s32.totalorder %v758, 1
        %vm778 = vcmp.lt.s32.totalorder %v758, 2
        %vm779 = vcmp.lt.s32.totalorder %v758, 3
        %vm780 = vcmp.lt.s32.totalorder %v758, 4
        %v781 = vsel %vm777, %v761, %v764
        %v782 = vsel %vm780, %v770, 2102212464
        %v783 = vsel %vm779, %v767, %v782
        %v784 = vsel %vm778, %v781, %v783
        %v785 = vsel %vm777, %v764, %v767
        %v786 = vsel %vm780, %v773, 920167782
        %v787 = vsel %vm779, %v770, %v786
        %v788 = vsel %vm778, %v785, %v787
        %v789 = vsel %vm777, %v767, %v770
        %v790 = vsel %vm780, %v776, 1326507024
        %v791 = vsel %vm779, %v773, %v790
        %v792 = vsel %vm778, %v789, %v791
        %v793 = vshll.u32 %v753, 8
        %v794 = vmul.u32.u64.compose %v793, %v792
        %v795 = vextract.low.u32 %v794
        %v796 = vextract.high.u32 %v794
        %v797 = vmul.u32.u64.compose %v793, %v788
        %v798 = vextract.low.u32 %v797
        %v799 = vextract.high.u32 %v797
        %v800 = vmul.u32 %v793, %v784
        %v801 = vadd.s32 %v796, %v798
        %vm802 = vc.u32 %v796, %v798
        %v803 = vadd.s32 %v799, 1
        %v804 = vsel %vm802, %v803, %v799
        %v805 = vadd.s32 %v800, %v804
        %v806 = vadd.s32 %v805, 536870912
        %v807 = vshrl.u32 %v806, 30
        %v808 = vshll.u32 %v807, 30
        %v809 = vsub.s32 %v805, %v808
        %vm810 = vcmp.lt.s32.totalorder %v809, 0
        %v811 = vsub.s32 0, %v809
        %v812 = vsel %vm810, %v811, %v809
        %v813 = vclz %v812
        %v814 = vsub.s32 %v813, 2
        %vm815 = vcmp.gt.s32.totalorder 0, %v814
        %v816 = vsel %vm815, 0, %v814
        %v817 = vsub.s32 32, %v816
        %v818 = vshll.u32 %v809, %v816
        %v819 = vshrl.u32 %v801, %v817
        %v820 = vor.u32 %v818, %v819
        %v821 = vsub.s32 4294967266, %v816
        %v822 = vadd.s32 %v821, 127
        %v823 = vshll.u32 %v822, 23
        %v824 = vor.u32 4788187, %v823
        %v825 = vand.u32 2147483647, %v824
        %v827 = vcvt.s32.f32 %v820
        %v828 = vmul.f32 %v827, %v825
        %v829 = vxor.u32 %v828, 2147483648
        %v830 = vsel %vm747, %v829, %v828
        %v831 = vsub.s32 4, %v807
        %v832 = vsel %vm747, %v831, %v807
        %v833 = vsel %vm746, %v420, %v830
        %v834 = vsel %vm746, 0, %v832
        %v835 = vcosq.f32.pop %v833
        %v836 = vsinq.f32.pop %v833
        %vm837 = vweird.f32 %v420
        %v838 = vadd.s32 %v834, 3
        %v839 = vand.u32 %v838, 3
        %vm840 = vcmp.lt.s32.totalorder %v839, 2
        %vm841 = vcmp.eq.s32.totalorder %v839, 0
        %v842 = vxor.u32 %v836, 2147483648
        %v843 = vsel %vm841, %v835, %v842
        %vm844 = vcmp.eq.s32.totalorder %v839, 2
        %v845 = vxor.u32 %v835, 2147483648
        %v846 = vsel %vm844, %v845, %v836
        %v847 = vsel %vm840, %v843, %v846
        %v848 = vsel %vm837, nan, %v847
        %v849 = vand.u32 2147483647, %v421
        %vm850 = vcmp.le.f32.partialorder %v849, 0.7853982
        %vm851 = vcmp.lt.s32.totalorder %v421, 0
        %v852 = vand.u32 %v421, 2139095040
        %v853 = vshrl.u32 %v852, 23
        %v854 = vsub.s32 %v853, 127
        %v855 = vand.u32 2147483647, %v421
        %v856 = vand.u32 %v855, 8388607
        %v857 = vor.u32 %v856, 8388608
        %v858 = vsub.s32 0, %v857
        %v859 = vadd.s32 %v854, 1
        %vm860 = vcmp.gt.s32.totalorder %v859, 0
        %v861 = vsel %vm860, %v859, 0
        %v862 = vshrl.u32 %v861, 5
        %v863 = vand.u32 %v861, 31
        %v864 = vsub.s32 32, %v863
        %v865 = vshrl.u32 683565275, %v864
        %v866 = vshll.u32 683565275, %v863
        %v867 = vshrl.u32 2475754826, %v864
        %v868 = vor.u32 %v866, %v867
        %v869 = vshll.u32 2475754826, %v863
        %v870 = vshrl.u32 2131351028, %v864
        %v871 = vor.u32 %v869, %v870
        %v872 = vshll.u32 2131351028, %v863
        %v873 = vshrl.u32 2102212464, %v864
        %v874 = vor.u32 %v872, %v873
        %v875 = vshll.u32 2102212464, %v863
        %v876 = vshrl.u32 920167782, %v864
        %v877 = vor.u32 %v875, %v876
        %v878 = vshll.u32 920167782, %v863
        %v879 = vshrl.u32 1326507024, %v864
        %v880 = vor.u32 %v878, %v879
        %vm881 = vcmp.lt.s32.totalorder %v862, 1
        %vm882 = vcmp.lt.s32.totalorder %v862, 2
        %vm883 = vcmp.lt.s32.totalorder %v862, 3
        %vm884 = vcmp.lt.s32.totalorder %v862, 4
        %v885 = vsel %vm881, %v865, %v868
        %v886 = vsel %vm884, %v874, 2102212464
        %v887 = vsel %vm883, %v871, %v886
        %v888 = vsel %vm882, %v885, %v887
        %v889 = vsel %vm881, %v868, %v871
        %v890 = vsel %vm884, %v877, 920167782
        %v891 = vsel %vm883, %v874, %v890
        %v892 = vsel %vm882, %v889, %v891
        %v893 = vsel %vm881, %v871, %v874
        %v894 = vsel %vm884, %v880, 1326507024
        %v895 = vsel %vm883, %v877, %v894
        %v896 = vsel %vm882, %v893, %v895
        %v897 = vshll.u32 %v857, 8
        %v898 = vmul.u32.u64.compose %v897, %v896
        %v899 = vextract.low.u32 %v898
        %v900 = vextract.high.u32 %v898
        %v901 = vmul.u32.u64.compose %v897, %v892
        %v902 = vextract.low.u32 %v901
        %v903 = vextract.high.u32 %v901
        %v904 = vmul.u32 %v897, %v888
        %v905 = vadd.s32 %v900, %v902
        %vm906 = vc.u32 %v900, %v902
        %v907 = vadd.s32 %v903, 1
        %v908 = vsel %vm906, %v907, %v903
        %v909 = vadd.s32 %v904, %v908
        %v910 = vadd.s32 %v909, 536870912
        %v911 = vshrl.u32 %v910, 30
        %v912 = vshll.u32 %v911, 30
        %v913 = vsub.s32 %v909, %v912
        %vm914 = vcmp.lt.s32.totalorder %v913, 0
        %v915 = vsub.s32 0, %v913
        %v916 = vsel %vm914, %v915, %v913
        %v917 = vclz %v916
        %v918 = vsub.s32 %v917, 2
        %vm919 = vcmp.gt.s32.totalorder 0, %v918
        %v920 = vsel %vm919, 0, %v918
        %v921 = vsub.s32 32, %v920
        %v922 = vshll.u32 %v913, %v920
        %v923 = vshrl.u32 %v905, %v921
        %v924 = vor.u32 %v922, %v923
        %v925 = vsub.s32 4294967266, %v920
        %v926 = vadd.s32 %v925, 127
        %v927 = vshll.u32 %v926, 23
        %v928 = vor.u32 4788187, %v927
        %v929 = vand.u32 2147483647, %v928
        %v931 = vcvt.s32.f32 %v924
        %v932 = vmul.f32 %v931, %v929
        %v933 = vxor.u32 %v932, 2147483648
        %v934 = vsel %vm851, %v933, %v932
        %v935 = vsub.s32 4, %v911
        %v936 = vsel %vm851, %v935, %v911
        %v937 = vsel %vm850, %v421, %v934
        %v938 = vsel %vm850, 0, %v936
        %v939 = vcosq.f32.pop %v937
        %v940 = vsinq.f32.pop %v937
        %vm941 = vweird.f32 %v421
        %v942 = vadd.s32 %v938, 3
        %v943 = vand.u32 %v942, 3
        %vm944 = vcmp.lt.s32.totalorder %v943, 2
        %vm945 = vcmp.eq.s32.totalorder %v943, 0
        %v946 = vxor.u32 %v940, 2147483648
        %v947 = vsel %vm945, %v939, %v946
        %vm948 = vcmp.eq.s32.totalorder %v943, 2
        %v949 = vxor.u32 %v939, 2147483648
        %v950 = vsel %vm948, %v949, %v940
        %v951 = vsel %vm944, %v947, %v950
        %v952 = vsel %vm941, nan, %v951
        %v953 = vand.u32 2147483647, %v422
        %vm954 = vcmp.le.f32.partialorder %v953, 0.7853982
        %vm955 = vcmp.lt.s32.totalorder %v422, 0
        %v956 = vand.u32 %v422, 2139095040
        %v957 = vshrl.u32 %v956, 23
        %v958 = vsub.s32 %v957, 127
        %v959 = vand.u32 2147483647, %v422
        %v960 = vand.u32 %v959, 8388607
        %v961 = vor.u32 %v960, 8388608
        %v962 = vsub.s32 0, %v961
        %v963 = vadd.s32 %v958, 1
        %vm964 = vcmp.gt.s32.totalorder %v963, 0
        %v965 = vsel %vm964, %v963, 0
        %v966 = vshrl.u32 %v965, 5
        %v967 = vand.u32 %v965, 31
        %v968 = vsub.s32 32, %v967
        %v969 = vshrl.u32 683565275, %v968
        %v970 = vshll.u32 683565275, %v967
        %v971 = vshrl.u32 2475754826, %v968
        %v972 = vor.u32 %v970, %v971
        %v973 = vshll.u32 2475754826, %v967
        %v974 = vshrl.u32 2131351028, %v968
        %v975 = vor.u32 %v973, %v974
        %v976 = vshll.u32 2131351028, %v967
        %v977 = vshrl.u32 2102212464, %v968
        %v978 = vor.u32 %v976, %v977
        %v979 = vshll.u32 2102212464, %v967
        %v980 = vshrl.u32 920167782, %v968
        %v981 = vor.u32 %v979, %v980
        %v982 = vshll.u32 920167782, %v967
        %v983 = vshrl.u32 1326507024, %v968
        %v984 = vor.u32 %v982, %v983
        %vm985 = vcmp.lt.s32.totalorder %v966, 1
        %vm986 = vcmp.lt.s32.totalorder %v966, 2
        %vm987 = vcmp.lt.s32.totalorder %v966, 3
        %vm988 = vcmp.lt.s32.totalorder %v966, 4
        %v989 = vsel %vm985, %v969, %v972
        %v990 = vsel %vm988, %v978, 2102212464
        %v991 = vsel %vm987, %v975, %v990
        %v992 = vsel %vm986, %v989, %v991
        %v993 = vsel %vm985, %v972, %v975
        %v994 = vsel %vm988, %v981, 920167782
        %v995 = vsel %vm987, %v978, %v994
        %v996 = vsel %vm986, %v993, %v995
        %v997 = vsel %vm985, %v975, %v978
        %v998 = vsel %vm988, %v984, 1326507024
        %v999 = vsel %vm987, %v981, %v998
        %v1000 = vsel %vm986, %v997, %v999
        %v1001 = vshll.u32 %v961, 8
        %v1002 = vmul.u32.u64.compose %v1001, %v1000
        %v1003 = vextract.low.u32 %v1002
        %v1004 = vextract.high.u32 %v1002
        %v1005 = vmul.u32.u64.compose %v1001, %v996
        %v1006 = vextract.low.u32 %v1005
        %v1007 = vextract.high.u32 %v1005
        %v1008 = vmul.u32 %v1001, %v992
        %v1009 = vadd.s32 %v1004, %v1006
        %vm1010 = vc.u32 %v1004, %v1006
        %v1011 = vadd.s32 %v1007, 1
        %v1012 = vsel %vm1010, %v1011, %v1007
        %v1013 = vadd.s32 %v1008, %v1012
        %v1014 = vadd.s32 %v1013, 536870912
        %v1015 = vshrl.u32 %v1014, 30
        %v1016 = vshll.u32 %v1015, 30
        %v1017 = vsub.s32 %v1013, %v1016
        %vm1018 = vcmp.lt.s32.totalorder %v1017, 0
        %v1019 = vsub.s32 0, %v1017
        %v1020 = vsel %vm1018, %v1019, %v1017
        %v1021 = vclz %v1020
        %v1022 = vsub.s32 %v1021, 2
        %vm1023 = vcmp.gt.s32.totalorder 0, %v1022
        %v1024 = vsel %vm1023, 0, %v1022
        %v1025 = vsub.s32 32, %v1024
        %v1026 = vshll.u32 %v1017, %v1024
        %v1027 = vshrl.u32 %v1009, %v1025
        %v1028 = vor.u32 %v1026, %v1027
        %v1029 = vsub.s32 4294967266, %v1024
        %v1030 = vadd.s32 %v1029, 127
        %v1031 = vshll.u32 %v1030, 23
        %v1032 = vor.u32 4788187, %v1031
        %v1033 = vand.u32 2147483647, %v1032
        %v1035 = vcvt.s32.f32 %v1028
        %v1036 = vmul.f32 %v1035, %v1033
        %v1037 = vxor.u32 %v1036, 2147483648
        %v1038 = vsel %vm955, %v1037, %v1036
        %v1039 = vsub.s32 4, %v1015
        %v1040 = vsel %vm955, %v1039, %v1015
        %v1041 = vsel %vm954, %v422, %v1038
        %v1042 = vsel %vm954, 0, %v1040
        %v1043 = vcosq.f32.pop %v1041
        %v1044 = vsinq.f32.pop %v1041
        %vm1045 = vweird.f32 %v422
        %v1046 = vadd.s32 %v1042, 3
        %v1047 = vand.u32 %v1046, 3
        %vm1048 = vcmp.lt.s32.totalorder %v1047, 2
        %vm1049 = vcmp.eq.s32.totalorder %v1047, 0
        %v1050 = vxor.u32 %v1044, 2147483648
        %v1051 = vsel %vm1049, %v1043, %v1050
        %vm1052 = vcmp.eq.s32.totalorder %v1047, 2
        %v1053 = vxor.u32 %v1043, 2147483648
        %v1054 = vsel %vm1052, %v1053, %v1044
        %v1055 = vsel %vm1048, %v1051, %v1054
        %v1056 = vsel %vm1045, nan, %v1055
        %v1057 = vand.u32 2147483647, %v423
        %vm1058 = vcmp.le.f32.partialorder %v1057, 0.7853982
        %vm1059 = vcmp.lt.s32.totalorder %v423, 0
        %v1060 = vand.u32 %v423, 2139095040
        %v1061 = vshrl.u32 %v1060, 23
        %v1062 = vsub.s32 %v1061, 127
        %v1063 = vand.u32 2147483647, %v423
        %v1064 = vand.u32 %v1063, 8388607
        %v1065 = vor.u32 %v1064, 8388608
        %v1066 = vsub.s32 0, %v1065
        %v1067 = vadd.s32 %v1062, 1
        %vm1068 = vcmp.gt.s32.totalorder %v1067, 0
        %v1069 = vsel %vm1068, %v1067, 0
        %v1070 = vshrl.u32 %v1069, 5
        %v1071 = vand.u32 %v1069, 31
        %v1072 = vsub.s32 32, %v1071
        %v1073 = vshrl.u32 683565275, %v1072
        %v1074 = vshll.u32 683565275, %v1071
        %v1075 = vshrl.u32 2475754826, %v1072
        %v1076 = vor.u32 %v1074, %v1075
        %v1077 = vshll.u32 2475754826, %v1071
        %v1078 = vshrl.u32 2131351028, %v1072
        %v1079 = vor.u32 %v1077, %v1078
        %v1080 = vshll.u32 2131351028, %v1071
        %v1081 = vshrl.u32 2102212464, %v1072
        %v1082 = vor.u32 %v1080, %v1081
        %v1083 = vshll.u32 2102212464, %v1071
        %v1084 = vshrl.u32 920167782, %v1072
        %v1085 = vor.u32 %v1083, %v1084
        %v1086 = vshll.u32 920167782, %v1071
        %v1087 = vshrl.u32 1326507024, %v1072
        %v1088 = vor.u32 %v1086, %v1087
        %vm1089 = vcmp.lt.s32.totalorder %v1070, 1
        %vm1090 = vcmp.lt.s32.totalorder %v1070, 2
        %vm1091 = vcmp.lt.s32.totalorder %v1070, 3
        %vm1092 = vcmp.lt.s32.totalorder %v1070, 4
        %v1093 = vsel %vm1089, %v1073, %v1076
        %v1094 = vsel %vm1092, %v1082, 2102212464
        %v1095 = vsel %vm1091, %v1079, %v1094
        %v1096 = vsel %vm1090, %v1093, %v1095
        %v1097 = vsel %vm1089, %v1076, %v1079
        %v1098 = vsel %vm1092, %v1085, 920167782
        %v1099 = vsel %vm1091, %v1082, %v1098
        %v1100 = vsel %vm1090, %v1097, %v1099
        %v1101 = vsel %vm1089, %v1079, %v1082
        %v1102 = vsel %vm1092, %v1088, 1326507024
        %v1103 = vsel %vm1091, %v1085, %v1102
        %v1104 = vsel %vm1090, %v1101, %v1103
        %v1105 = vshll.u32 %v1065, 8
        %v1106 = vmul.u32.u64.compose %v1105, %v1104
        %v1107 = vextract.low.u32 %v1106
        %v1108 = vextract.high.u32 %v1106
        %v1109 = vmul.u32.u64.compose %v1105, %v1100
        %v1110 = vextract.low.u32 %v1109
        %v1111 = vextract.high.u32 %v1109
        %v1112 = vmul.u32 %v1105, %v1096
        %v1113 = vadd.s32 %v1108, %v1110
        %vm1114 = vc.u32 %v1108, %v1110
        %v1115 = vadd.s32 %v1111, 1
        %v1116 = vsel %vm1114, %v1115, %v1111
        %v1117 = vadd.s32 %v1112, %v1116
        %v1118 = vadd.s32 %v1117, 536870912
        %v1119 = vshrl.u32 %v1118, 30
        %v1120 = vshll.u32 %v1119, 30
        %v1121 = vsub.s32 %v1117, %v1120
        %vm1122 = vcmp.lt.s32.totalorder %v1121, 0
        %v1123 = vsub.s32 0, %v1121
        %v1124 = vsel %vm1122, %v1123, %v1121
        %v1125 = vclz %v1124
        %v1126 = vsub.s32 %v1125, 2
        %vm1127 = vcmp.gt.s32.totalorder 0, %v1126
        %v1128 = vsel %vm1127, 0, %v1126
        %v1129 = vsub.s32 32, %v1128
        %v1130 = vshll.u32 %v1121, %v1128
        %v1131 = vshrl.u32 %v1113, %v1129
        %v1132 = vor.u32 %v1130, %v1131
        %v1133 = vsub.s32 4294967266, %v1128
        %v1134 = vadd.s32 %v1133, 127
        %v1135 = vshll.u32 %v1134, 23
        %v1136 = vor.u32 4788187, %v1135
        %v1137 = vand.u32 2147483647, %v1136
        %v1139 = vcvt.s32.f32 %v1132
        %v1140 = vmul.f32 %v1139, %v1137
        %v1141 = vxor.u32 %v1140, 2147483648
        %v1142 = vsel %vm1059, %v1141, %v1140
        %v1143 = vsub.s32 4, %v1119
        %v1144 = vsel %vm1059, %v1143, %v1119
        %v1145 = vsel %vm1058, %v423, %v1142
        %v1146 = vsel %vm1058, 0, %v1144
        %v1147 = vcosq.f32.pop %v1145
        %v1148 = vsinq.f32.pop %v1145
        %vm1149 = vweird.f32 %v423
        %v1150 = vadd.s32 %v1146, 3
        %v1151 = vand.u32 %v1150, 3
        %vm1152 = vcmp.lt.s32.totalorder %v1151, 2
        %vm1153 = vcmp.eq.s32.totalorder %v1151, 0
        %v1154 = vxor.u32 %v1148, 2147483648
        %v1155 = vsel %vm1153, %v1147, %v1154
        %vm1156 = vcmp.eq.s32.totalorder %v1151, 2
        %v1157 = vxor.u32 %v1147, 2147483648
        %v1158 = vsel %vm1156, %v1157, %v1148
        %v1159 = vsel %vm1152, %v1155, %v1158
        %v1160 = vsel %vm1149, nan, %v1159
        %v1161 = vand.u32 2147483647, %v424
        %vm1162 = vcmp.le.f32.partialorder %v1161, 0.7853982
        %vm1163 = vcmp.lt.s32.totalorder %v424, 0
        %v1164 = vand.u32 %v424, 2139095040
        %v1165 = vshrl.u32 %v1164, 23
        %v1166 = vsub.s32 %v1165, 127
        %v1167 = vand.u32 2147483647, %v424
        %v1168 = vand.u32 %v1167, 8388607
        %v1169 = vor.u32 %v1168, 8388608
        %v1170 = vsub.s32 0, %v1169
        %v1171 = vadd.s32 %v1166, 1
        %vm1172 = vcmp.gt.s32.totalorder %v1171, 0
        %v1173 = vsel %vm1172, %v1171, 0
        %v1174 = vshrl.u32 %v1173, 5
        %v1175 = vand.u32 %v1173, 31
        %v1176 = vsub.s32 32, %v1175
        %v1177 = vshrl.u32 683565275, %v1176
        %v1178 = vshll.u32 683565275, %v1175
        %v1179 = vshrl.u32 2475754826, %v1176
        %v1180 = vor.u32 %v1178, %v1179
        %v1181 = vshll.u32 2475754826, %v1175
        %v1182 = vshrl.u32 2131351028, %v1176
        %v1183 = vor.u32 %v1181, %v1182
        %v1184 = vshll.u32 2131351028, %v1175
        %v1185 = vshrl.u32 2102212464, %v1176
        %v1186 = vor.u32 %v1184, %v1185
        %v1187 = vshll.u32 2102212464, %v1175
        %v1188 = vshrl.u32 920167782, %v1176
        %v1189 = vor.u32 %v1187, %v1188
        %v1190 = vshll.u32 920167782, %v1175
        %v1191 = vshrl.u32 1326507024, %v1176
        %v1192 = vor.u32 %v1190, %v1191
        %vm1193 = vcmp.lt.s32.totalorder %v1174, 1
        %vm1194 = vcmp.lt.s32.totalorder %v1174, 2
        %vm1195 = vcmp.lt.s32.totalorder %v1174, 3
        %vm1196 = vcmp.lt.s32.totalorder %v1174, 4
        %v1197 = vsel %vm1193, %v1177, %v1180
        %v1198 = vsel %vm1196, %v1186, 2102212464
        %v1199 = vsel %vm1195, %v1183, %v1198
        %v1200 = vsel %vm1194, %v1197, %v1199
        %v1201 = vsel %vm1193, %v1180, %v1183
        %v1202 = vsel %vm1196, %v1189, 920167782
        %v1203 = vsel %vm1195, %v1186, %v1202
        %v1204 = vsel %vm1194, %v1201, %v1203
        %v1205 = vsel %vm1193, %v1183, %v1186
        %v1206 = vsel %vm1196, %v1192, 1326507024
        %v1207 = vsel %vm1195, %v1189, %v1206
        %v1208 = vsel %vm1194, %v1205, %v1207
        %v1209 = vshll.u32 %v1169, 8
        %v1210 = vmul.u32.u64.compose %v1209, %v1208
        %v1211 = vextract.low.u32 %v1210
        %v1212 = vextract.high.u32 %v1210
        %v1213 = vmul.u32.u64.compose %v1209, %v1204
        %v1214 = vextract.low.u32 %v1213
        %v1215 = vextract.high.u32 %v1213
        %v1216 = vmul.u32 %v1209, %v1200
        %v1217 = vadd.s32 %v1212, %v1214
        %vm1218 = vc.u32 %v1212, %v1214
        %v1219 = vadd.s32 %v1215, 1
        %v1220 = vsel %vm1218, %v1219, %v1215
        %v1221 = vadd.s32 %v1216, %v1220
        %v1222 = vadd.s32 %v1221, 536870912
        %v1223 = vshrl.u32 %v1222, 30
        %v1224 = vshll.u32 %v1223, 30
        %v1225 = vsub.s32 %v1221, %v1224
        %vm1226 = vcmp.lt.s32.totalorder %v1225, 0
        %v1227 = vsub.s32 0, %v1225
        %v1228 = vsel %vm1226, %v1227, %v1225
        %v1229 = vclz %v1228
        %v1230 = vsub.s32 %v1229, 2
        %vm1231 = vcmp.gt.s32.totalorder 0, %v1230
        %v1232 = vsel %vm1231, 0, %v1230
        %v1233 = vsub.s32 32, %v1232
        %v1234 = vshll.u32 %v1225, %v1232
        %v1235 = vshrl.u32 %v1217, %v1233
        %v1236 = vor.u32 %v1234, %v1235
        %v1237 = vsub.s32 4294967266, %v1232
        %v1238 = vadd.s32 %v1237, 127
        %v1239 = vshll.u32 %v1238, 23
        %v1240 = vor.u32 4788187, %v1239
        %v1241 = vand.u32 2147483647, %v1240
        %v1243 = vcvt.s32.f32 %v1236
        %v1244 = vmul.f32 %v1243, %v1241
        %v1245 = vxor.u32 %v1244, 2147483648
        %v1246 = vsel %vm1163, %v1245, %v1244
        %v1247 = vsub.s32 4, %v1223
        %v1248 = vsel %vm1163, %v1247, %v1223
        %v1249 = vsel %vm1162, %v424, %v1246
        %v1250 = vsel %vm1162, 0, %v1248
        %v1251 = vcosq.f32.pop %v1249
        %v1252 = vsinq.f32.pop %v1249
        %vm1253 = vweird.f32 %v424
        %v1254 = vadd.s32 %v1250, 3
        %v1255 = vand.u32 %v1254, 3
        %vm1256 = vcmp.lt.s32.totalorder %v1255, 2
        %vm1257 = vcmp.eq.s32.totalorder %v1255, 0
        %v1258 = vxor.u32 %v1252, 2147483648
        %v1259 = vsel %vm1257, %v1251, %v1258
        %vm1260 = vcmp.eq.s32.totalorder %v1255, 2
        %v1261 = vxor.u32 %v1251, 2147483648
        %v1262 = vsel %vm1260, %v1261, %v1252
        %v1263 = vsel %vm1256, %v1259, %v1262
        %v1264 = vsel %vm1253, nan, %v1263
        %v1265 = vand.u32 2147483647, %v425
        %vm1266 = vcmp.le.f32.partialorder %v1265, 0.7853982
        %vm1267 = vcmp.lt.s32.totalorder %v425, 0
        %v1268 = vand.u32 %v425, 2139095040
        %v1269 = vshrl.u32 %v1268, 23
        %v1270 = vsub.s32 %v1269, 127
        %v1271 = vand.u32 2147483647, %v425
        %v1272 = vand.u32 %v1271, 8388607
        %v1273 = vor.u32 %v1272, 8388608
        %v1274 = vsub.s32 0, %v1273
        %v1275 = vadd.s32 %v1270, 1
        %vm1276 = vcmp.gt.s32.totalorder %v1275, 0
        %v1277 = vsel %vm1276, %v1275, 0
        %v1278 = vshrl.u32 %v1277, 5
        %v1279 = vand.u32 %v1277, 31
        %v1280 = vsub.s32 32, %v1279
        %v1281 = vshrl.u32 683565275, %v1280
        %v1282 = vshll.u32 683565275, %v1279
        %v1283 = vshrl.u32 2475754826, %v1280
        %v1284 = vor.u32 %v1282, %v1283
        %v1285 = vshll.u32 2475754826, %v1279
        %v1286 = vshrl.u32 2131351028, %v1280
        %v1287 = vor.u32 %v1285, %v1286
        %v1288 = vshll.u32 2131351028, %v1279
        %v1289 = vshrl.u32 2102212464, %v1280
        %v1290 = vor.u32 %v1288, %v1289
        %v1291 = vshll.u32 2102212464, %v1279
        %v1292 = vshrl.u32 920167782, %v1280
        %v1293 = vor.u32 %v1291, %v1292
        %v1294 = vshll.u32 920167782, %v1279
        %v1295 = vshrl.u32 1326507024, %v1280
        %v1296 = vor.u32 %v1294, %v1295
        %vm1297 = vcmp.lt.s32.totalorder %v1278, 1
        %vm1298 = vcmp.lt.s32.totalorder %v1278, 2
        %vm1299 = vcmp.lt.s32.totalorder %v1278, 3
        %vm1300 = vcmp.lt.s32.totalorder %v1278, 4
        %v1301 = vsel %vm1297, %v1281, %v1284
        %v1302 = vsel %vm1300, %v1290, 2102212464
        %v1303 = vsel %vm1299, %v1287, %v1302
        %v1304 = vsel %vm1298, %v1301, %v1303
        %v1305 = vsel %vm1297, %v1284, %v1287
        %v1306 = vsel %vm1300, %v1293, 920167782
        %v1307 = vsel %vm1299, %v1290, %v1306
        %v1308 = vsel %vm1298, %v1305, %v1307
        %v1309 = vsel %vm1297, %v1287, %v1290
        %v1310 = vsel %vm1300, %v1296, 1326507024
        %v1311 = vsel %vm1299, %v1293, %v1310
        %v1312 = vsel %vm1298, %v1309, %v1311
        %v1313 = vshll.u32 %v1273, 8
        %v1314 = vmul.u32.u64.compose %v1313, %v1312
        %v1315 = vextract.low.u32 %v1314
        %v1316 = vextract.high.u32 %v1314
        %v1317 = vmul.u32.u64.compose %v1313, %v1308
        %v1318 = vextract.low.u32 %v1317
        %v1319 = vextract.high.u32 %v1317
        %v1320 = vmul.u32 %v1313, %v1304
        %v1321 = vadd.s32 %v1316, %v1318
        %vm1322 = vc.u32 %v1316, %v1318
        %v1323 = vadd.s32 %v1319, 1
        %v1324 = vsel %vm1322, %v1323, %v1319
        %v1325 = vadd.s32 %v1320, %v1324
        %v1326 = vadd.s32 %v1325, 536870912
        %v1327 = vshrl.u32 %v1326, 30
        %v1328 = vshll.u32 %v1327, 30
        %v1329 = vsub.s32 %v1325, %v1328
        %vm1330 = vcmp.lt.s32.totalorder %v1329, 0
        %v1331 = vsub.s32 0, %v1329
        %v1332 = vsel %vm1330, %v1331, %v1329
        %v1333 = vclz %v1332
        %v1334 = vsub.s32 %v1333, 2
        %vm1335 = vcmp.gt.s32.totalorder 0, %v1334
        %v1336 = vsel %vm1335, 0, %v1334
        %v1337 = vsub.s32 32, %v1336
        %v1338 = vshll.u32 %v1329, %v1336
        %v1339 = vshrl.u32 %v1321, %v1337
        %v1340 = vor.u32 %v1338, %v1339
        %v1341 = vsub.s32 4294967266, %v1336
        %v1342 = vadd.s32 %v1341, 127
        %v1343 = vshll.u32 %v1342, 23
        %v1344 = vor.u32 4788187, %v1343
        %v1345 = vand.u32 2147483647, %v1344
        %v1347 = vcvt.s32.f32 %v1340
        %v1348 = vmul.f32 %v1347, %v1345
        %v1349 = vxor.u32 %v1348, 2147483648
        %v1350 = vsel %vm1267, %v1349, %v1348
        %v1351 = vsub.s32 4, %v1327
        %v1352 = vsel %vm1267, %v1351, %v1327
        %v1353 = vsel %vm1266, %v425, %v1350
        %v1354 = vsel %vm1266, 0, %v1352
        %v1355 = vcosq.f32.pop %v1353
        %v1356 = vsinq.f32.pop %v1353
        %vm1357 = vweird.f32 %v425
        %v1358 = vadd.s32 %v1354, 3
        %v1359 = vand.u32 %v1358, 3
        %vm1360 = vcmp.lt.s32.totalorder %v1359, 2
        %vm1361 = vcmp.eq.s32.totalorder %v1359, 0
        %v1362 = vxor.u32 %v1356, 2147483648
        %v1363 = vsel %vm1361, %v1355, %v1362
        %vm1364 = vcmp.eq.s32.totalorder %v1359, 2
        %v1365 = vxor.u32 %v1355, 2147483648
        %v1366 = vsel %vm1364, %v1365, %v1356
        %v1367 = vsel %vm1360, %v1363, %v1366
        %v1368 = vsel %vm1357, nan, %v1367
        %v1369 = vand.u32 2147483647, %v426
        %vm1370 = vcmp.le.f32.partialorder %v1369, 0.7853982
        %vm1371 = vcmp.lt.s32.totalorder %v426, 0
        %v1372 = vand.u32 %v426, 2139095040
        %v1373 = vshrl.u32 %v1372, 23
        %v1374 = vsub.s32 %v1373, 127
        %v1375 = vand.u32 2147483647, %v426
        %v1376 = vand.u32 %v1375, 8388607
        %v1377 = vor.u32 %v1376, 8388608
        %v1378 = vsub.s32 0, %v1377
        %v1379 = vadd.s32 %v1374, 1
        %vm1380 = vcmp.gt.s32.totalorder %v1379, 0
        %v1381 = vsel %vm1380, %v1379, 0
        %v1382 = vshrl.u32 %v1381, 5
        %v1383 = vand.u32 %v1381, 31
        %v1384 = vsub.s32 32, %v1383
        %v1385 = vshrl.u32 683565275, %v1384
        %v1386 = vshll.u32 683565275, %v1383
        %v1387 = vshrl.u32 2475754826, %v1384
        %v1388 = vor.u32 %v1386, %v1387
        %v1389 = vshll.u32 2475754826, %v1383
        %v1390 = vshrl.u32 2131351028, %v1384
        %v1391 = vor.u32 %v1389, %v1390
        %v1392 = vshll.u32 2131351028, %v1383
        %v1393 = vshrl.u32 2102212464, %v1384
        %v1394 = vor.u32 %v1392, %v1393
        %v1395 = vshll.u32 2102212464, %v1383
        %v1396 = vshrl.u32 920167782, %v1384
        %v1397 = vor.u32 %v1395, %v1396
        %v1398 = vshll.u32 920167782, %v1383
        %v1399 = vshrl.u32 1326507024, %v1384
        %v1400 = vor.u32 %v1398, %v1399
        %vm1401 = vcmp.lt.s32.totalorder %v1382, 1
        %vm1402 = vcmp.lt.s32.totalorder %v1382, 2
        %vm1403 = vcmp.lt.s32.totalorder %v1382, 3
        %vm1404 = vcmp.lt.s32.totalorder %v1382, 4
        %v1405 = vsel %vm1401, %v1385, %v1388
        %v1406 = vsel %vm1404, %v1394, 2102212464
        %v1407 = vsel %vm1403, %v1391, %v1406
        %v1408 = vsel %vm1402, %v1405, %v1407
        %v1409 = vsel %vm1401, %v1388, %v1391
        %v1410 = vsel %vm1404, %v1397, 920167782
        %v1411 = vsel %vm1403, %v1394, %v1410
        %v1412 = vsel %vm1402, %v1409, %v1411
        %v1413 = vsel %vm1401, %v1391, %v1394
        %v1414 = vsel %vm1404, %v1400, 1326507024
        %v1415 = vsel %vm1403, %v1397, %v1414
        %v1416 = vsel %vm1402, %v1413, %v1415
        %v1417 = vshll.u32 %v1377, 8
        %v1418 = vmul.u32.u64.compose %v1417, %v1416
        %v1419 = vextract.low.u32 %v1418
        %v1420 = vextract.high.u32 %v1418
        %v1421 = vmul.u32.u64.compose %v1417, %v1412
        %v1422 = vextract.low.u32 %v1421
        %v1423 = vextract.high.u32 %v1421
        %v1424 = vmul.u32 %v1417, %v1408
        %v1425 = vadd.s32 %v1420, %v1422
        %vm1426 = vc.u32 %v1420, %v1422
        %v1427 = vadd.s32 %v1423, 1
        %v1428 = vsel %vm1426, %v1427, %v1423
        %v1429 = vadd.s32 %v1424, %v1428
        %v1430 = vadd.s32 %v1429, 536870912
        %v1431 = vshrl.u32 %v1430, 30
        %v1432 = vshll.u32 %v1431, 30
        %v1433 = vsub.s32 %v1429, %v1432
        %vm1434 = vcmp.lt.s32.totalorder %v1433, 0
        %v1435 = vsub.s32 0, %v1433
        %v1436 = vsel %vm1434, %v1435, %v1433
        %v1437 = vclz %v1436
        %v1438 = vsub.s32 %v1437, 2
        %vm1439 = vcmp.gt.s32.totalorder 0, %v1438
        %v1440 = vsel %vm1439, 0, %v1438
        %v1441 = vsub.s32 32, %v1440
        %v1442 = vshll.u32 %v1433, %v1440
        %v1443 = vshrl.u32 %v1425, %v1441
        %v1444 = vor.u32 %v1442, %v1443
        %v1445 = vsub.s32 4294967266, %v1440
        %v1446 = vadd.s32 %v1445, 127
        %v1447 = vshll.u32 %v1446, 23
        %v1448 = vor.u32 4788187, %v1447
        %v1449 = vand.u32 2147483647, %v1448
        %v1451 = vcvt.s32.f32 %v1444
        %v1452 = vmul.f32 %v1451, %v1449
        %v1453 = vxor.u32 %v1452, 2147483648
        %v1454 = vsel %vm1371, %v1453, %v1452
        %v1455 = vsub.s32 4, %v1431
        %v1456 = vsel %vm1371, %v1455, %v1431
        %v1457 = vsel %vm1370, %v426, %v1454
        %v1458 = vsel %vm1370, 0, %v1456
        %v1459 = vcosq.f32.pop %v1457
        %v1460 = vsinq.f32.pop %v1457
        %vm1461 = vweird.f32 %v426
        %v1462 = vadd.s32 %v1458, 3
        %v1463 = vand.u32 %v1462, 3
        %vm1464 = vcmp.lt.s32.totalorder %v1463, 2
        %vm1465 = vcmp.eq.s32.totalorder %v1463, 0
        %v1466 = vxor.u32 %v1460, 2147483648
        %v1467 = vsel %vm1465, %v1459, %v1466
        %vm1468 = vcmp.eq.s32.totalorder %v1463, 2
        %v1469 = vxor.u32 %v1459, 2147483648
        %v1470 = vsel %vm1468, %v1469, %v1460
        %v1471 = vsel %vm1464, %v1467, %v1470
        %v1472 = vsel %vm1461, nan, %v1471
        %v1473 = vand.u32 2147483647, %v427
        %vm1474 = vcmp.le.f32.partialorder %v1473, 0.7853982
        %vm1475 = vcmp.lt.s32.totalorder %v427, 0
        %v1476 = vand.u32 %v427, 2139095040
        %v1477 = vshrl.u32 %v1476, 23
        %v1478 = vsub.s32 %v1477, 127
        %v1479 = vand.u32 2147483647, %v427
        %v1480 = vand.u32 %v1479, 8388607
        %v1481 = vor.u32 %v1480, 8388608
        %v1482 = vsub.s32 0, %v1481
        %v1483 = vadd.s32 %v1478, 1
        %vm1484 = vcmp.gt.s32.totalorder %v1483, 0
        %v1485 = vsel %vm1484, %v1483, 0
        %v1486 = vshrl.u32 %v1485, 5
        %v1487 = vand.u32 %v1485, 31
        %v1488 = vsub.s32 32, %v1487
        %v1489 = vshrl.u32 683565275, %v1488
        %v1490 = vshll.u32 683565275, %v1487
        %v1491 = vshrl.u32 2475754826, %v1488
        %v1492 = vor.u32 %v1490, %v1491
        %v1493 = vshll.u32 2475754826, %v1487
        %v1494 = vshrl.u32 2131351028, %v1488
        %v1495 = vor.u32 %v1493, %v1494
        %v1496 = vshll.u32 2131351028, %v1487
        %v1497 = vshrl.u32 2102212464, %v1488
        %v1498 = vor.u32 %v1496, %v1497
        %v1499 = vshll.u32 2102212464, %v1487
        %v1500 = vshrl.u32 920167782, %v1488
        %v1501 = vor.u32 %v1499, %v1500
        %v1502 = vshll.u32 920167782, %v1487
        %v1503 = vshrl.u32 1326507024, %v1488
        %v1504 = vor.u32 %v1502, %v1503
        %vm1505 = vcmp.lt.s32.totalorder %v1486, 1
        %vm1506 = vcmp.lt.s32.totalorder %v1486, 2
        %vm1507 = vcmp.lt.s32.totalorder %v1486, 3
        %vm1508 = vcmp.lt.s32.totalorder %v1486, 4
        %v1509 = vsel %vm1505, %v1489, %v1492
        %v1510 = vsel %vm1508, %v1498, 2102212464
        %v1511 = vsel %vm1507, %v1495, %v1510
        %v1512 = vsel %vm1506, %v1509, %v1511
        %v1513 = vsel %vm1505, %v1492, %v1495
        %v1514 = vsel %vm1508, %v1501, 920167782
        %v1515 = vsel %vm1507, %v1498, %v1514
        %v1516 = vsel %vm1506, %v1513, %v1515
        %v1517 = vsel %vm1505, %v1495, %v1498
        %v1518 = vsel %vm1508, %v1504, 1326507024
        %v1519 = vsel %vm1507, %v1501, %v1518
        %v1520 = vsel %vm1506, %v1517, %v1519
        %v1521 = vshll.u32 %v1481, 8
        %v1522 = vmul.u32.u64.compose %v1521, %v1520
        %v1523 = vextract.low.u32 %v1522
        %v1524 = vextract.high.u32 %v1522
        %v1525 = vmul.u32.u64.compose %v1521, %v1516
        %v1526 = vextract.low.u32 %v1525
        %v1527 = vextract.high.u32 %v1525
        %v1528 = vmul.u32 %v1521, %v1512
        %v1529 = vadd.s32 %v1524, %v1526
        %vm1530 = vc.u32 %v1524, %v1526
        %v1531 = vadd.s32 %v1527, 1
        %v1532 = vsel %vm1530, %v1531, %v1527
        %v1533 = vadd.s32 %v1528, %v1532
        %v1534 = vadd.s32 %v1533, 536870912
        %v1535 = vshrl.u32 %v1534, 30
        %v1536 = vshll.u32 %v1535, 30
        %v1537 = vsub.s32 %v1533, %v1536
        %vm1538 = vcmp.lt.s32.totalorder %v1537, 0
        %v1539 = vsub.s32 0, %v1537
        %v1540 = vsel %vm1538, %v1539, %v1537
        %v1541 = vclz %v1540
        %v1542 = vsub.s32 %v1541, 2
        %vm1543 = vcmp.gt.s32.totalorder 0, %v1542
        %v1544 = vsel %vm1543, 0, %v1542
        %v1545 = vsub.s32 32, %v1544
        %v1546 = vshll.u32 %v1537, %v1544
        %v1547 = vshrl.u32 %v1529, %v1545
        %v1548 = vor.u32 %v1546, %v1547
        %v1549 = vsub.s32 4294967266, %v1544
        %v1550 = vadd.s32 %v1549, 127
        %v1551 = vshll.u32 %v1550, 23
        %v1552 = vor.u32 4788187, %v1551
        %v1553 = vand.u32 2147483647, %v1552
        %v1555 = vcvt.s32.f32 %v1548
        %v1556 = vmul.f32 %v1555, %v1553
        %v1557 = vxor.u32 %v1556, 2147483648
        %v1558 = vsel %vm1475, %v1557, %v1556
        %v1559 = vsub.s32 4, %v1535
        %v1560 = vsel %vm1475, %v1559, %v1535
        %v1561 = vsel %vm1474, %v427, %v1558
        %v1562 = vsel %vm1474, 0, %v1560
        %v1563 = vcosq.f32.pop %v1561
        %v1564 = vsinq.f32.pop %v1561
        %vm1565 = vweird.f32 %v427
        %v1566 = vadd.s32 %v1562, 3
        %v1567 = vand.u32 %v1566, 3
        %vm1568 = vcmp.lt.s32.totalorder %v1567, 2
        %vm1569 = vcmp.eq.s32.totalorder %v1567, 0
        %v1570 = vxor.u32 %v1564, 2147483648
        %v1571 = vsel %vm1569, %v1563, %v1570
        %vm1572 = vcmp.eq.s32.totalorder %v1567, 2
        %v1573 = vxor.u32 %v1563, 2147483648
        %v1574 = vsel %vm1572, %v1573, %v1564
        %v1575 = vsel %vm1568, %v1571, %v1574
        %v1576 = vsel %vm1565, nan, %v1575
        %v1577 = vand.u32 2147483647, %v428
        %vm1578 = vcmp.le.f32.partialorder %v1577, 0.7853982
        %vm1579 = vcmp.lt.s32.totalorder %v428, 0
        %v1580 = vand.u32 %v428, 2139095040
        %v1581 = vshrl.u32 %v1580, 23
        %v1582 = vsub.s32 %v1581, 127
        %v1583 = vand.u32 2147483647, %v428
        %v1584 = vand.u32 %v1583, 8388607
        %v1585 = vor.u32 %v1584, 8388608
        %v1586 = vsub.s32 0, %v1585
        %v1587 = vadd.s32 %v1582, 1
        %vm1588 = vcmp.gt.s32.totalorder %v1587, 0
        %v1589 = vsel %vm1588, %v1587, 0
        %v1590 = vshrl.u32 %v1589, 5
        %v1591 = vand.u32 %v1589, 31
        %v1592 = vsub.s32 32, %v1591
        %v1593 = vshrl.u32 683565275, %v1592
        %v1594 = vshll.u32 683565275, %v1591
        %v1595 = vshrl.u32 2475754826, %v1592
        %v1596 = vor.u32 %v1594, %v1595
        %v1597 = vshll.u32 2475754826, %v1591
        %v1598 = vshrl.u32 2131351028, %v1592
        %v1599 = vor.u32 %v1597, %v1598
        %v1600 = vshll.u32 2131351028, %v1591
        %v1601 = vshrl.u32 2102212464, %v1592
        %v1602 = vor.u32 %v1600, %v1601
        %v1603 = vshll.u32 2102212464, %v1591
        %v1604 = vshrl.u32 920167782, %v1592
        %v1605 = vor.u32 %v1603, %v1604
        %v1606 = vshll.u32 920167782, %v1591
        %v1607 = vshrl.u32 1326507024, %v1592
        %v1608 = vor.u32 %v1606, %v1607
        %vm1609 = vcmp.lt.s32.totalorder %v1590, 1
        %vm1610 = vcmp.lt.s32.totalorder %v1590, 2
        %vm1611 = vcmp.lt.s32.totalorder %v1590, 3
        %vm1612 = vcmp.lt.s32.totalorder %v1590, 4
        %v1613 = vsel %vm1609, %v1593, %v1596
        %v1614 = vsel %vm1612, %v1602, 2102212464
        %v1615 = vsel %vm1611, %v1599, %v1614
        %v1616 = vsel %vm1610, %v1613, %v1615
        %v1617 = vsel %vm1609, %v1596, %v1599
        %v1618 = vsel %vm1612, %v1605, 920167782
        %v1619 = vsel %vm1611, %v1602, %v1618
        %v1620 = vsel %vm1610, %v1617, %v1619
        %v1621 = vsel %vm1609, %v1599, %v1602
        %v1622 = vsel %vm1612, %v1608, 1326507024
        %v1623 = vsel %vm1611, %v1605, %v1622
        %v1624 = vsel %vm1610, %v1621, %v1623
        %v1625 = vshll.u32 %v1585, 8
        %v1626 = vmul.u32.u64.compose %v1625, %v1624
        %v1627 = vextract.low.u32 %v1626
        %v1628 = vextract.high.u32 %v1626
        %v1629 = vmul.u32.u64.compose %v1625, %v1620
        %v1630 = vextract.low.u32 %v1629
        %v1631 = vextract.high.u32 %v1629
        %v1632 = vmul.u32 %v1625, %v1616
        %v1633 = vadd.s32 %v1628, %v1630
        %vm1634 = vc.u32 %v1628, %v1630
        %v1635 = vadd.s32 %v1631, 1
        %v1636 = vsel %vm1634, %v1635, %v1631
        %v1637 = vadd.s32 %v1632, %v1636
        %v1638 = vadd.s32 %v1637, 536870912
        %v1639 = vshrl.u32 %v1638, 30
        %v1640 = vshll.u32 %v1639, 30
        %v1641 = vsub.s32 %v1637, %v1640
        %vm1642 = vcmp.lt.s32.totalorder %v1641, 0
        %v1643 = vsub.s32 0, %v1641
        %v1644 = vsel %vm1642, %v1643, %v1641
        %v1645 = vclz %v1644
        %v1646 = vsub.s32 %v1645, 2
        %vm1647 = vcmp.gt.s32.totalorder 0, %v1646
        %v1648 = vsel %vm1647, 0, %v1646
        %v1649 = vsub.s32 32, %v1648
        %v1650 = vshll.u32 %v1641, %v1648
        %v1651 = vshrl.u32 %v1633, %v1649
        %v1652 = vor.u32 %v1650, %v1651
        %v1653 = vsub.s32 4294967266, %v1648
        %v1654 = vadd.s32 %v1653, 127
        %v1655 = vshll.u32 %v1654, 23
        %v1656 = vor.u32 4788187, %v1655
        %v1657 = vand.u32 2147483647, %v1656
        %v1659 = vcvt.s32.f32 %v1652
        %v1660 = vmul.f32 %v1659, %v1657
        %v1661 = vxor.u32 %v1660, 2147483648
        %v1662 = vsel %vm1579, %v1661, %v1660
        %v1663 = vsub.s32 4, %v1639
        %v1664 = vsel %vm1579, %v1663, %v1639
        %v1665 = vsel %vm1578, %v428, %v1662
        %v1666 = vsel %vm1578, 0, %v1664
        %v1667 = vcosq.f32.pop %v1665
        %v1668 = vsinq.f32.pop %v1665
        %vm1669 = vweird.f32 %v428
        %v1670 = vadd.s32 %v1666, 3
        %v1671 = vand.u32 %v1670, 3
        %vm1672 = vcmp.lt.s32.totalorder %v1671, 2
        %vm1673 = vcmp.eq.s32.totalorder %v1671, 0
        %v1674 = vxor.u32 %v1668, 2147483648
        %v1675 = vsel %vm1673, %v1667, %v1674
        %vm1676 = vcmp.eq.s32.totalorder %v1671, 2
        %v1677 = vxor.u32 %v1667, 2147483648
        %v1678 = vsel %vm1676, %v1677, %v1668
        %v1679 = vsel %vm1672, %v1675, %v1678
        %v1680 = vsel %vm1669, nan, %v1679
        %v1681 = vand.u32 2147483647, %v429
        %vm1682 = vcmp.le.f32.partialorder %v1681, 0.7853982
        %vm1683 = vcmp.lt.s32.totalorder %v429, 0
        %v1684 = vand.u32 %v429, 2139095040
        %v1685 = vshrl.u32 %v1684, 23
        %v1686 = vsub.s32 %v1685, 127
        %v1687 = vand.u32 2147483647, %v429
        %v1688 = vand.u32 %v1687, 8388607
        %v1689 = vor.u32 %v1688, 8388608
        %v1690 = vsub.s32 0, %v1689
        %v1691 = vadd.s32 %v1686, 1
        %vm1692 = vcmp.gt.s32.totalorder %v1691, 0
        %v1693 = vsel %vm1692, %v1691, 0
        %v1694 = vshrl.u32 %v1693, 5
        %v1695 = vand.u32 %v1693, 31
        %v1696 = vsub.s32 32, %v1695
        %v1697 = vshrl.u32 683565275, %v1696
        %v1698 = vshll.u32 683565275, %v1695
        %v1699 = vshrl.u32 2475754826, %v1696
        %v1700 = vor.u32 %v1698, %v1699
        %v1701 = vshll.u32 2475754826, %v1695
        %v1702 = vshrl.u32 2131351028, %v1696
        %v1703 = vor.u32 %v1701, %v1702
        %v1704 = vshll.u32 2131351028, %v1695
        %v1705 = vshrl.u32 2102212464, %v1696
        %v1706 = vor.u32 %v1704, %v1705
        %v1707 = vshll.u32 2102212464, %v1695
        %v1708 = vshrl.u32 920167782, %v1696
        %v1709 = vor.u32 %v1707, %v1708
        %v1710 = vshll.u32 920167782, %v1695
        %v1711 = vshrl.u32 1326507024, %v1696
        %v1712 = vor.u32 %v1710, %v1711
        %vm1713 = vcmp.lt.s32.totalorder %v1694, 1
        %vm1714 = vcmp.lt.s32.totalorder %v1694, 2
        %vm1715 = vcmp.lt.s32.totalorder %v1694, 3
        %vm1716 = vcmp.lt.s32.totalorder %v1694, 4
        %v1717 = vsel %vm1713, %v1697, %v1700
        %v1718 = vsel %vm1716, %v1706, 2102212464
        %v1719 = vsel %vm1715, %v1703, %v1718
        %v1720 = vsel %vm1714, %v1717, %v1719
        %v1721 = vsel %vm1713, %v1700, %v1703
        %v1722 = vsel %vm1716, %v1709, 920167782
        %v1723 = vsel %vm1715, %v1706, %v1722
        %v1724 = vsel %vm1714, %v1721, %v1723
        %v1725 = vsel %vm1713, %v1703, %v1706
        %v1726 = vsel %vm1716, %v1712, 1326507024
        %v1727 = vsel %vm1715, %v1709, %v1726
        %v1728 = vsel %vm1714, %v1725, %v1727
        %v1729 = vshll.u32 %v1689, 8
        %v1730 = vmul.u32.u64.compose %v1729, %v1728
        %v1731 = vextract.low.u32 %v1730
        %v1732 = vextract.high.u32 %v1730
        %v1733 = vmul.u32.u64.compose %v1729, %v1724
        %v1734 = vextract.low.u32 %v1733
        %v1735 = vextract.high.u32 %v1733
        %v1736 = vmul.u32 %v1729, %v1720
        %v1737 = vadd.s32 %v1732, %v1734
        %vm1738 = vc.u32 %v1732, %v1734
        %v1739 = vadd.s32 %v1735, 1
        %v1740 = vsel %vm1738, %v1739, %v1735
        %v1741 = vadd.s32 %v1736, %v1740
        %v1742 = vadd.s32 %v1741, 536870912
        %v1743 = vshrl.u32 %v1742, 30
        %v1744 = vshll.u32 %v1743, 30
        %v1745 = vsub.s32 %v1741, %v1744
        %vm1746 = vcmp.lt.s32.totalorder %v1745, 0
        %v1747 = vsub.s32 0, %v1745
        %v1748 = vsel %vm1746, %v1747, %v1745
        %v1749 = vclz %v1748
        %v1750 = vsub.s32 %v1749, 2
        %vm1751 = vcmp.gt.s32.totalorder 0, %v1750
        %v1752 = vsel %vm1751, 0, %v1750
        %v1753 = vsub.s32 32, %v1752
        %v1754 = vshll.u32 %v1745, %v1752
        %v1755 = vshrl.u32 %v1737, %v1753
        %v1756 = vor.u32 %v1754, %v1755
        %v1757 = vsub.s32 4294967266, %v1752
        %v1758 = vadd.s32 %v1757, 127
        %v1759 = vshll.u32 %v1758, 23
        %v1760 = vor.u32 4788187, %v1759
        %v1761 = vand.u32 2147483647, %v1760
        %v1763 = vcvt.s32.f32 %v1756
        %v1764 = vmul.f32 %v1763, %v1761
        %v1765 = vxor.u32 %v1764, 2147483648
        %v1766 = vsel %vm1683, %v1765, %v1764
        %v1767 = vsub.s32 4, %v1743
        %v1768 = vsel %vm1683, %v1767, %v1743
        %v1769 = vsel %vm1682, %v429, %v1766
        %v1770 = vsel %vm1682, 0, %v1768
        %v1771 = vcosq.f32.pop %v1769
        %v1772 = vsinq.f32.pop %v1769
        %vm1773 = vweird.f32 %v429
        %v1774 = vadd.s32 %v1770, 3
        %v1775 = vand.u32 %v1774, 3
        %vm1776 = vcmp.lt.s32.totalorder %v1775, 2
        %vm1777 = vcmp.eq.s32.totalorder %v1775, 0
        %v1778 = vxor.u32 %v1772, 2147483648
        %v1779 = vsel %vm1777, %v1771, %v1778
        %vm1780 = vcmp.eq.s32.totalorder %v1775, 2
        %v1781 = vxor.u32 %v1771, 2147483648
        %v1782 = vsel %vm1780, %v1781, %v1772
        %v1783 = vsel %vm1776, %v1779, %v1782
        %v1784 = vsel %vm1773, nan, %v1783
        %v1785 = vand.u32 2147483647, %v430
        %vm1786 = vcmp.le.f32.partialorder %v1785, 0.7853982
        %vm1787 = vcmp.lt.s32.totalorder %v430, 0
        %v1788 = vand.u32 %v430, 2139095040
        %v1789 = vshrl.u32 %v1788, 23
        %v1790 = vsub.s32 %v1789, 127
        %v1791 = vand.u32 2147483647, %v430
        %v1792 = vand.u32 %v1791, 8388607
        %v1793 = vor.u32 %v1792, 8388608
        %v1794 = vsub.s32 0, %v1793
        %v1795 = vadd.s32 %v1790, 1
        %vm1796 = vcmp.gt.s32.totalorder %v1795, 0
        %v1797 = vsel %vm1796, %v1795, 0
        %v1798 = vshrl.u32 %v1797, 5
        %v1799 = vand.u32 %v1797, 31
        %v1800 = vsub.s32 32, %v1799
        %v1801 = vshrl.u32 683565275, %v1800
        %v1802 = vshll.u32 683565275, %v1799
        %v1803 = vshrl.u32 2475754826, %v1800
        %v1804 = vor.u32 %v1802, %v1803
        %v1805 = vshll.u32 2475754826, %v1799
        %v1806 = vshrl.u32 2131351028, %v1800
        %v1807 = vor.u32 %v1805, %v1806
        %v1808 = vshll.u32 2131351028, %v1799
        %v1809 = vshrl.u32 2102212464, %v1800
        %v1810 = vor.u32 %v1808, %v1809
        %v1811 = vshll.u32 2102212464, %v1799
        %v1812 = vshrl.u32 920167782, %v1800
        %v1813 = vor.u32 %v1811, %v1812
        %v1814 = vshll.u32 920167782, %v1799
        %v1815 = vshrl.u32 1326507024, %v1800
        %v1816 = vor.u32 %v1814, %v1815
        %vm1817 = vcmp.lt.s32.totalorder %v1798, 1
        %vm1818 = vcmp.lt.s32.totalorder %v1798, 2
        %vm1819 = vcmp.lt.s32.totalorder %v1798, 3
        %vm1820 = vcmp.lt.s32.totalorder %v1798, 4
        %v1821 = vsel %vm1817, %v1801, %v1804
        %v1822 = vsel %vm1820, %v1810, 2102212464
        %v1823 = vsel %vm1819, %v1807, %v1822
        %v1824 = vsel %vm1818, %v1821, %v1823
        %v1825 = vsel %vm1817, %v1804, %v1807
        %v1826 = vsel %vm1820, %v1813, 920167782
        %v1827 = vsel %vm1819, %v1810, %v1826
        %v1828 = vsel %vm1818, %v1825, %v1827
        %v1829 = vsel %vm1817, %v1807, %v1810
        %v1830 = vsel %vm1820, %v1816, 1326507024
        %v1831 = vsel %vm1819, %v1813, %v1830
        %v1832 = vsel %vm1818, %v1829, %v1831
        %v1833 = vshll.u32 %v1793, 8
        %v1834 = vmul.u32.u64.compose %v1833, %v1832
        %v1835 = vextract.low.u32 %v1834
        %v1836 = vextract.high.u32 %v1834
        %v1837 = vmul.u32.u64.compose %v1833, %v1828
        %v1838 = vextract.low.u32 %v1837
        %v1839 = vextract.high.u32 %v1837
        %v1840 = vmul.u32 %v1833, %v1824
        %v1841 = vadd.s32 %v1836, %v1838
        %vm1842 = vc.u32 %v1836, %v1838
        %v1843 = vadd.s32 %v1839, 1
        %v1844 = vsel %vm1842, %v1843, %v1839
        %v1845 = vadd.s32 %v1840, %v1844
        %v1846 = vadd.s32 %v1845, 536870912
        %v1847 = vshrl.u32 %v1846, 30
        %v1848 = vshll.u32 %v1847, 30
        %v1849 = vsub.s32 %v1845, %v1848
        %vm1850 = vcmp.lt.s32.totalorder %v1849, 0
        %v1851 = vsub.s32 0, %v1849
        %v1852 = vsel %vm1850, %v1851, %v1849
        %v1853 = vclz %v1852
        %v1854 = vsub.s32 %v1853, 2
        %vm1855 = vcmp.gt.s32.totalorder 0, %v1854
        %v1856 = vsel %vm1855, 0, %v1854
        %v1857 = vsub.s32 32, %v1856
        %v1858 = vshll.u32 %v1849, %v1856
        %v1859 = vshrl.u32 %v1841, %v1857
        %v1860 = vor.u32 %v1858, %v1859
        %v1861 = vsub.s32 4294967266, %v1856
        %v1862 = vadd.s32 %v1861, 127
        %v1863 = vshll.u32 %v1862, 23
        %v1864 = vor.u32 4788187, %v1863
        %v1865 = vand.u32 2147483647, %v1864
        %v1867 = vcvt.s32.f32 %v1860
        %v1868 = vmul.f32 %v1867, %v1865
        %v1869 = vxor.u32 %v1868, 2147483648
        %v1870 = vsel %vm1787, %v1869, %v1868
        %v1871 = vsub.s32 4, %v1847
        %v1872 = vsel %vm1787, %v1871, %v1847
        %v1873 = vsel %vm1786, %v430, %v1870
        %v1874 = vsel %vm1786, 0, %v1872
        %v1875 = vcosq.f32.pop %v1873
        %v1876 = vsinq.f32.pop %v1873
        %vm1877 = vweird.f32 %v430
        %v1878 = vadd.s32 %v1874, 3
        %v1879 = vand.u32 %v1878, 3
        %vm1880 = vcmp.lt.s32.totalorder %v1879, 2
        %vm1881 = vcmp.eq.s32.totalorder %v1879, 0
        %v1882 = vxor.u32 %v1876, 2147483648
        %v1883 = vsel %vm1881, %v1875, %v1882
        %vm1884 = vcmp.eq.s32.totalorder %v1879, 2
        %v1885 = vxor.u32 %v1875, 2147483648
        %v1886 = vsel %vm1884, %v1885, %v1876
        %v1887 = vsel %vm1880, %v1883, %v1886
        %v1888 = vsel %vm1877, nan, %v1887
        %v1889 = vand.u32 2147483647, %v431
        %vm1890 = vcmp.le.f32.partialorder %v1889, 0.7853982
        %vm1891 = vcmp.lt.s32.totalorder %v431, 0
        %v1892 = vand.u32 %v431, 2139095040
        %v1893 = vshrl.u32 %v1892, 23
        %v1894 = vsub.s32 %v1893, 127
        %v1895 = vand.u32 2147483647, %v431
        %v1896 = vand.u32 %v1895, 8388607
        %v1897 = vor.u32 %v1896, 8388608
        %v1898 = vsub.s32 0, %v1897
        %v1899 = vadd.s32 %v1894, 1
        %vm1900 = vcmp.gt.s32.totalorder %v1899, 0
        %v1901 = vsel %vm1900, %v1899, 0
        %v1902 = vshrl.u32 %v1901, 5
        %v1903 = vand.u32 %v1901, 31
        %v1904 = vsub.s32 32, %v1903
        %v1905 = vshrl.u32 683565275, %v1904
        %v1906 = vshll.u32 683565275, %v1903
        %v1907 = vshrl.u32 2475754826, %v1904
        %v1908 = vor.u32 %v1906, %v1907
        %v1909 = vshll.u32 2475754826, %v1903
        %v1910 = vshrl.u32 2131351028, %v1904
        %v1911 = vor.u32 %v1909, %v1910
        %v1912 = vshll.u32 2131351028, %v1903
        %v1913 = vshrl.u32 2102212464, %v1904
        %v1914 = vor.u32 %v1912, %v1913
        %v1915 = vshll.u32 2102212464, %v1903
        %v1916 = vshrl.u32 920167782, %v1904
        %v1917 = vor.u32 %v1915, %v1916
        %v1918 = vshll.u32 920167782, %v1903
        %v1919 = vshrl.u32 1326507024, %v1904
        %v1920 = vor.u32 %v1918, %v1919
        %vm1921 = vcmp.lt.s32.totalorder %v1902, 1
        %vm1922 = vcmp.lt.s32.totalorder %v1902, 2
        %vm1923 = vcmp.lt.s32.totalorder %v1902, 3
        %vm1924 = vcmp.lt.s32.totalorder %v1902, 4
        %v1925 = vsel %vm1921, %v1905, %v1908
        %v1926 = vsel %vm1924, %v1914, 2102212464
        %v1927 = vsel %vm1923, %v1911, %v1926
        %v1928 = vsel %vm1922, %v1925, %v1927
        %v1929 = vsel %vm1921, %v1908, %v1911
        %v1930 = vsel %vm1924, %v1917, 920167782
        %v1931 = vsel %vm1923, %v1914, %v1930
        %v1932 = vsel %vm1922, %v1929, %v1931
        %v1933 = vsel %vm1921, %v1911, %v1914
        %v1934 = vsel %vm1924, %v1920, 1326507024
        %v1935 = vsel %vm1923, %v1917, %v1934
        %v1936 = vsel %vm1922, %v1933, %v1935
        %v1937 = vshll.u32 %v1897, 8
        %v1938 = vmul.u32.u64.compose %v1937, %v1936
        %v1939 = vextract.low.u32 %v1938
        %v1940 = vextract.high.u32 %v1938
        %v1941 = vmul.u32.u64.compose %v1937, %v1932
        %v1942 = vextract.low.u32 %v1941
        %v1943 = vextract.high.u32 %v1941
        %v1944 = vmul.u32 %v1937, %v1928
        %v1945 = vadd.s32 %v1940, %v1942
        %vm1946 = vc.u32 %v1940, %v1942
        %v1947 = vadd.s32 %v1943, 1
        %v1948 = vsel %vm1946, %v1947, %v1943
        %v1949 = vadd.s32 %v1944, %v1948
        %v1950 = vadd.s32 %v1949, 536870912
        %v1951 = vshrl.u32 %v1950, 30
        %v1952 = vshll.u32 %v1951, 30
        %v1953 = vsub.s32 %v1949, %v1952
        %vm1954 = vcmp.lt.s32.totalorder %v1953, 0
        %v1955 = vsub.s32 0, %v1953
        %v1956 = vsel %vm1954, %v1955, %v1953
        %v1957 = vclz %v1956
        %v1958 = vsub.s32 %v1957, 2
        %vm1959 = vcmp.gt.s32.totalorder 0, %v1958
        %v1960 = vsel %vm1959, 0, %v1958
        %v1961 = vsub.s32 32, %v1960
        %v1962 = vshll.u32 %v1953, %v1960
        %v1963 = vshrl.u32 %v1945, %v1961
        %v1964 = vor.u32 %v1962, %v1963
        %v1965 = vsub.s32 4294967266, %v1960
        %v1966 = vadd.s32 %v1965, 127
        %v1967 = vshll.u32 %v1966, 23
        %v1968 = vor.u32 4788187, %v1967
        %v1969 = vand.u32 2147483647, %v1968
        %v1971 = vcvt.s32.f32 %v1964
        %v1972 = vmul.f32 %v1971, %v1969
        %v1973 = vxor.u32 %v1972, 2147483648
        %v1974 = vsel %vm1891, %v1973, %v1972
        %v1975 = vsub.s32 4, %v1951
        %v1976 = vsel %vm1891, %v1975, %v1951
        %v1977 = vsel %vm1890, %v431, %v1974
        %v1978 = vsel %vm1890, 0, %v1976
        %v1979 = vcosq.f32.pop %v1977
        %v1980 = vsinq.f32.pop %v1977
        %vm1981 = vweird.f32 %v431
        %v1982 = vadd.s32 %v1978, 3
        %v1983 = vand.u32 %v1982, 3
        %vm1984 = vcmp.lt.s32.totalorder %v1983, 2
        %vm1985 = vcmp.eq.s32.totalorder %v1983, 0
        %v1986 = vxor.u32 %v1980, 2147483648
        %v1987 = vsel %vm1985, %v1979, %v1986
        %vm1988 = vcmp.eq.s32.totalorder %v1983, 2
        %v1989 = vxor.u32 %v1979, 2147483648
        %v1990 = vsel %vm1988, %v1989, %v1980
        %v1991 = vsel %vm1984, %v1987, %v1990
        %v1992 = vsel %vm1981, nan, %v1991
        %v1993 = vand.u32 2147483647, %v432
        %vm1994 = vcmp.le.f32.partialorder %v1993, 0.7853982
        %vm1995 = vcmp.lt.s32.totalorder %v432, 0
        %v1996 = vand.u32 %v432, 2139095040
        %v1997 = vshrl.u32 %v1996, 23
        %v1998 = vsub.s32 %v1997, 127
        %v1999 = vand.u32 2147483647, %v432
        %v2000 = vand.u32 %v1999, 8388607
        %v2001 = vor.u32 %v2000, 8388608
        %v2002 = vsub.s32 0, %v2001
        %v2003 = vadd.s32 %v1998, 1
        %vm2004 = vcmp.gt.s32.totalorder %v2003, 0
        %v2005 = vsel %vm2004, %v2003, 0
        %v2006 = vshrl.u32 %v2005, 5
        %v2007 = vand.u32 %v2005, 31
        %v2008 = vsub.s32 32, %v2007
        %v2009 = vshrl.u32 683565275, %v2008
        %v2010 = vshll.u32 683565275, %v2007
        %v2011 = vshrl.u32 2475754826, %v2008
        %v2012 = vor.u32 %v2010, %v2011
        %v2013 = vshll.u32 2475754826, %v2007
        %v2014 = vshrl.u32 2131351028, %v2008
        %v2015 = vor.u32 %v2013, %v2014
        %v2016 = vshll.u32 2131351028, %v2007
        %v2017 = vshrl.u32 2102212464, %v2008
        %v2018 = vor.u32 %v2016, %v2017
        %v2019 = vshll.u32 2102212464, %v2007
        %v2020 = vshrl.u32 920167782, %v2008
        %v2021 = vor.u32 %v2019, %v2020
        %v2022 = vshll.u32 920167782, %v2007
        %v2023 = vshrl.u32 1326507024, %v2008
        %v2024 = vor.u32 %v2022, %v2023
        %vm2025 = vcmp.lt.s32.totalorder %v2006, 1
        %vm2026 = vcmp.lt.s32.totalorder %v2006, 2
        %vm2027 = vcmp.lt.s32.totalorder %v2006, 3
        %vm2028 = vcmp.lt.s32.totalorder %v2006, 4
        %v2029 = vsel %vm2025, %v2009, %v2012
        %v2030 = vsel %vm2028, %v2018, 2102212464
        %v2031 = vsel %vm2027, %v2015, %v2030
        %v2032 = vsel %vm2026, %v2029, %v2031
        %v2033 = vsel %vm2025, %v2012, %v2015
        %v2034 = vsel %vm2028, %v2021, 920167782
        %v2035 = vsel %vm2027, %v2018, %v2034
        %v2036 = vsel %vm2026, %v2033, %v2035
        %v2037 = vsel %vm2025, %v2015, %v2018
        %v2038 = vsel %vm2028, %v2024, 1326507024
        %v2039 = vsel %vm2027, %v2021, %v2038
        %v2040 = vsel %vm2026, %v2037, %v2039
        %v2041 = vshll.u32 %v2001, 8
        %v2042 = vmul.u32.u64.compose %v2041, %v2040
        %v2043 = vextract.low.u32 %v2042
        %v2044 = vextract.high.u32 %v2042
        %v2045 = vmul.u32.u64.compose %v2041, %v2036
        %v2046 = vextract.low.u32 %v2045
        %v2047 = vextract.high.u32 %v2045
        %v2048 = vmul.u32 %v2041, %v2032
        %v2049 = vadd.s32 %v2044, %v2046
        %vm2050 = vc.u32 %v2044, %v2046
        %v2051 = vadd.s32 %v2047, 1
        %v2052 = vsel %vm2050, %v2051, %v2047
        %v2053 = vadd.s32 %v2048, %v2052
        %v2054 = vadd.s32 %v2053, 536870912
        %v2055 = vshrl.u32 %v2054, 30
        %v2056 = vshll.u32 %v2055, 30
        %v2057 = vsub.s32 %v2053, %v2056
        %vm2058 = vcmp.lt.s32.totalorder %v2057, 0
        %v2059 = vsub.s32 0, %v2057
        %v2060 = vsel %vm2058, %v2059, %v2057
        %v2061 = vclz %v2060
        %v2062 = vsub.s32 %v2061, 2
        %vm2063 = vcmp.gt.s32.totalorder 0, %v2062
        %v2064 = vsel %vm2063, 0, %v2062
        %v2065 = vsub.s32 32, %v2064
        %v2066 = vshll.u32 %v2057, %v2064
        %v2067 = vshrl.u32 %v2049, %v2065
        %v2068 = vor.u32 %v2066, %v2067
        %v2069 = vsub.s32 4294967266, %v2064
        %v2070 = vadd.s32 %v2069, 127
        %v2071 = vshll.u32 %v2070, 23
        %v2072 = vor.u32 4788187, %v2071
        %v2073 = vand.u32 2147483647, %v2072
        %v2075 = vcvt.s32.f32 %v2068
        %v2076 = vmul.f32 %v2075, %v2073
        %v2077 = vxor.u32 %v2076, 2147483648
        %v2078 = vsel %vm1995, %v2077, %v2076
        %v2079 = vsub.s32 4, %v2055
        %v2080 = vsel %vm1995, %v2079, %v2055
        %v2081 = vsel %vm1994, %v432, %v2078
        %v2082 = vsel %vm1994, 0, %v2080
        %v2083 = vcosq.f32.pop %v2081
        %v2084 = vsinq.f32.pop %v2081
        %vm2085 = vweird.f32 %v432
        %v2086 = vadd.s32 %v2082, 3
        %v2087 = vand.u32 %v2086, 3
        %vm2088 = vcmp.lt.s32.totalorder %v2087, 2
        %vm2089 = vcmp.eq.s32.totalorder %v2087, 0
        %v2090 = vxor.u32 %v2084, 2147483648
        %v2091 = vsel %vm2089, %v2083, %v2090
        %vm2092 = vcmp.eq.s32.totalorder %v2087, 2
        %v2093 = vxor.u32 %v2083, 2147483648
        %v2094 = vsel %vm2092, %v2093, %v2084
        %v2095 = vsel %vm2088, %v2091, %v2094
        %v2096 = vsel %vm2085, nan, %v2095
        %2097 = vst [vmem:[%s130] sm:$0xff] %v536
        %2098 = vst [vmem:[%s130 + $0x8] sm:$0xff] %v640
        %2099 = vst [vmem:[%s130 + $0x10] sm:$0xff] %v744
        %2100 = vst [vmem:[%s130 + $0x18] sm:$0xff] %v848
        %2101 = vst [vmem:[%s130 + $0x20] sm:$0xff] %v952
        %2102 = vst [vmem:[%s130 + $0x28] sm:$0xff] %v1056
        %2103 = vst [vmem:[%s130 + $0x30] sm:$0xff] %v1160
        %2104 = vst [vmem:[%s130 + $0x38] sm:$0xff] %v1264
        %2105 = vst [vmem:[%s130 + $0x40] sm:$0xff] %v1368
        %2106 = vst [vmem:[%s130 + $0x48] sm:$0xff] %v1472
        %2107 = vst [vmem:[%s130 + $0x50] sm:$0xff] %v1576
        %2108 = vst [vmem:[%s130 + $0x58] sm:$0xff] %v1680
        %2109 = vst [vmem:[%s130 + $0x60] sm:$0xff] %v1784
        %2110 = vst [vmem:[%s130 + $0x68] sm:$0xff] %v1888
        %2111 = vst [vmem:[%s130 + $0x70] sm:$0xff] %v1992
        %2112 = vst [vmem:[%s130 + $0x78] sm:$0xff] %v2096
        %s2113 = sand.u32 %s68, 1
        %s2114 = sand.u32 %s68, 1
        %s2115 = smul.addr %s2114, 128
        %s2116 = scalar_lea.vmem [#allocation2], %s2115
        // Predicated region
        $region29: #{position_embedding_random_forward.1} parent=27 // pred_check
          %p2117 = pneg %p78
        $region30: #{position_embedding_random_forward.1} parent=27 // pred_check_branch
          %2119 = sbr.rel (%p2117) target = $region32
        $region31: #{position_embedding_random_forward.1} parent=27 // pred_region
          %s2120 = smul.addr %s13, 8
          %s2121 = scalar_lea.vmem %s2, %s2120
          // Predicated region
          $region33: #{position_embedding_random_forward.1} parent=31 // pred_check
            _
          $region34: #{position_embedding_random_forward.1} parent=31 // pred_check_branch
            %2123 = sbr.rel (0) target = $region36
          $region35: #{position_embedding_random_forward.1} parent=31 // pred_region
            // Predicated region
            $region37: #{position_embedding_random_forward.1} parent=35 // pred_check
              _
            $region38: #{position_embedding_random_forward.1} parent=35 // pred_check_branch
              %2125 = sbr.rel (0) target = $region40
            $region39: #{position_embedding_random_forward.1} parent=35 // pred_region
              // Predicated region
              $region52: #{position_embedding_random_forward.1} parent=39 // pred_check
                _
              $region53: #{position_embedding_random_forward.1} parent=39 // pred_check_branch
                %2170 = sbr.rel (0) target = $region55
              $region54: #{position_embedding_random_forward.1} parent=39 // pred_region
                loop: start=0, step=1, limit=1
                $region56: #{position_embedding_random_forward.1} parent=54 // loop_pre_header
                  _
                $region57: #{position_embedding_random_forward.1} parent=54 // loop_header
                  %s2172 = sphi 0, %s2176
                  %p2173 = scmp.ge.s32.totalorder %s2172, 1
                  %s2177 = sphi %s2116, %s2116
                  %s2178 = sphi %s2121, %s2121
                $region58: #{position_embedding_random_forward.1} parent=54 // loop_header_branch
                  %2175 = sbr.rel (%p2173) target = $region62
                $region59: #{position_embedding_random_forward.1} parent=54 // loop_body
                  %v2179 = vld [vmem:[%s2177] sm:$0xff]
                  %2180 = vst [vmem:[%s2178] sm:$0xff] %v2179
                  %v2181 = vld [vmem:[%s2177 + $0x8] sm:$0xff]
                  %2182 = vst [vmem:[%s2178 + $0x10] sm:$0xff] %v2181
                  %v2183 = vld [vmem:[%s2177 + $0x10] sm:$0xff]
                  %2184 = vst [vmem:[%s2178 + $0x20] sm:$0xff] %v2183
                  %v2185 = vld [vmem:[%s2177 + $0x18] sm:$0xff]
                  %2186 = vst [vmem:[%s2178 + $0x30] sm:$0xff] %v2185
                  %v2187 = vld [vmem:[%s2177 + $0x20] sm:$0xff]
                  %2188 = vst [vmem:[%s2178 + $0x40] sm:$0xff] %v2187
                  %v2189 = vld [vmem:[%s2177 + $0x28] sm:$0xff]
                  %2190 = vst [vmem:[%s2178 + $0x50] sm:$0xff] %v2189
                  %v2191 = vld [vmem:[%s2177 + $0x30] sm:$0xff]
                  %2192 = vst [vmem:[%s2178 + $0x60] sm:$0xff] %v2191
                  %v2193 = vld [vmem:[%s2177 + $0x38] sm:$0xff]
                  %2194 = vst [vmem:[%s2178 + $0x70] sm:$0xff] %v2193
                  %v2195 = vld [vmem:[%s2177 + $0x40] sm:$0xff]
                  %2196 = vst [vmem:[%s2178 + $0x80] sm:$0xff] %v2195
                  %v2197 = vld [vmem:[%s2177 + $0x48] sm:$0xff]
                  %2198 = vst [vmem:[%s2178 + $0x90] sm:$0xff] %v2197
                  %v2199 = vld [vmem:[%s2177 + $0x50] sm:$0xff]
                  %2200 = vst [vmem:[%s2178 + $0xa0] sm:$0xff] %v2199
                  %v2201 = vld [vmem:[%s2177 + $0x58] sm:$0xff]
                  %2202 = vst [vmem:[%s2178 + $0xb0] sm:$0xff] %v2201
                  %v2203 = vld [vmem:[%s2177 + $0x60] sm:$0xff]
                  %2204 = vst [vmem:[%s2178 + $0xc0] sm:$0xff] %v2203
                  %v2205 = vld [vmem:[%s2177 + $0x68] sm:$0xff]
                  %2206 = vst [vmem:[%s2178 + $0xd0] sm:$0xff] %v2205
                  %v2207 = vld [vmem:[%s2177 + $0x70] sm:$0xff]
                  %2208 = vst [vmem:[%s2178 + $0xe0] sm:$0xff] %v2207
                  %v2209 = vld [vmem:[%s2177 + $0x78] sm:$0xff]
                  %2210 = vst [vmem:[%s2178 + $0xf0] sm:$0xff] %v2209
                $region60: #{position_embedding_random_forward.1} parent=54 // loop_footer
                  %s2176 = sadd.s32 1, %s2172
                $region61: #{position_embedding_random_forward.1} parent=54 // loop_footer_branch
                  %2171 = sbr.rel target = $region57
                $region62: #{position_embedding_random_forward.1} parent=54 // loop_exit
                  _
              $region55: #{position_embedding_random_forward.1} parent=39 // pred_fallthru
                _
              // Predicated region
              $region63: #{position_embedding_random_forward.1} parent=39 // pred_check
                _
              $region64: #{position_embedding_random_forward.1} parent=39 // pred_check_branch
                %2212 = sbr.rel target = $region66
              $region65: #{position_embedding_random_forward.1} parent=39 // pred_region
                _
              $region66: #{position_embedding_random_forward.1} parent=39 // pred_fallthru
                _
            $region40: #{position_embedding_random_forward.1} parent=35 // pred_fallthru
              _
            // Predicated region
            $region41: #{position_embedding_random_forward.1} parent=35 // pred_check
              _
            $region42: #{position_embedding_random_forward.1} parent=35 // pred_check_branch
              %2127 = sbr.rel target = $region44
            $region43: #{position_embedding_random_forward.1} parent=35 // pred_region
              loop: start=0, step=1, limit=1
              $region45: #{position_embedding_random_forward.1} parent=43 // loop_pre_header
                _
              $region46: #{position_embedding_random_forward.1} parent=43 // loop_header
                %s2130 = sphi 0, %s2134
                %p2131 = scmp.ge.s32.totalorder %s2130, 1
                %s2135 = sphi %s2116, %s2116
                %s2136 = sphi %s2121, %s2121
              $region47: #{position_embedding_random_forward.1} parent=43 // loop_header_branch
                %2133 = sbr.rel (%p2131) target = $region51
              $region48: #{position_embedding_random_forward.1} parent=43 // loop_body
                %v2137 = vld [vmem:[%s2135] sm:$0xff]
                %2138 = vst [vmem:[%s2136] sm:$0xff] %v2137
                %v2139 = vld [vmem:[%s2135 + $0x8] sm:$0xff]
                %2140 = vst [vmem:[%s2136 + $0x10] sm:$0xff] %v2139
                %v2141 = vld [vmem:[%s2135 + $0x10] sm:$0xff]
                %2142 = vst [vmem:[%s2136 + $0x20] sm:$0xff] %v2141
                %v2143 = vld [vmem:[%s2135 + $0x18] sm:$0xff]
                %2144 = vst [vmem:[%s2136 + $0x30] sm:$0xff] %v2143
                %v2145 = vld [vmem:[%s2135 + $0x20] sm:$0xff]
                %2146 = vst [vmem:[%s2136 + $0x40] sm:$0xff] %v2145
                %v2147 = vld [vmem:[%s2135 + $0x28] sm:$0xff]
                %2148 = vst [vmem:[%s2136 + $0x50] sm:$0xff] %v2147
                %v2149 = vld [vmem:[%s2135 + $0x30] sm:$0xff]
                %2150 = vst [vmem:[%s2136 + $0x60] sm:$0xff] %v2149
                %v2151 = vld [vmem:[%s2135 + $0x38] sm:$0xff]
                %2152 = vst [vmem:[%s2136 + $0x70] sm:$0xff] %v2151
                %v2153 = vld [vmem:[%s2135 + $0x40] sm:$0xff]
                %2154 = vst [vmem:[%s2136 + $0x80] sm:$0xff] %v2153
                %v2155 = vld [vmem:[%s2135 + $0x48] sm:$0xff]
                %2156 = vst [vmem:[%s2136 + $0x90] sm:$0xff] %v2155
                %v2157 = vld [vmem:[%s2135 + $0x50] sm:$0xff]
                %2158 = vst [vmem:[%s2136 + $0xa0] sm:$0xff] %v2157
                %v2159 = vld [vmem:[%s2135 + $0x58] sm:$0xff]
                %2160 = vst [vmem:[%s2136 + $0xb0] sm:$0xff] %v2159
                %v2161 = vld [vmem:[%s2135 + $0x60] sm:$0xff]
                %2162 = vst [vmem:[%s2136 + $0xc0] sm:$0xff] %v2161
                %v2163 = vld [vmem:[%s2135 + $0x68] sm:$0xff]
                %2164 = vst [vmem:[%s2136 + $0xd0] sm:$0xff] %v2163
                %v2165 = vld [vmem:[%s2135 + $0x70] sm:$0xff]
                %2166 = vst [vmem:[%s2136 + $0xe0] sm:$0xff] %v2165
                %v2167 = vld [vmem:[%s2135 + $0x78] sm:$0xff]
                %2168 = vst [vmem:[%s2136 + $0xf0] sm:$0xff] %v2167
              $region49: #{position_embedding_random_forward.1} parent=43 // loop_footer
                %s2134 = sadd.s32 1, %s2130
              $region50: #{position_embedding_random_forward.1} parent=43 // loop_footer_branch
                %2129 = sbr.rel target = $region46
              $region51: #{position_embedding_random_forward.1} parent=43 // loop_exit
                _
            $region44: #{position_embedding_random_forward.1} parent=35 // pred_fallthru
              _
          $region36: #{position_embedding_random_forward.1} parent=31 // pred_fallthru
            _
          %2213 = vnop
        $region32: #{position_embedding_random_forward.1} parent=27 // pred_fallthru
          _
      $region28: #{position_embedding_random_forward.1} parent=5 // pred_fallthru
        _
      %p2214 = scmp.le.s32.totalorder 2, %s8
      // Predicated region
      $region67: #{position_embedding_random_forward.1} parent=5 // pred_check
        %p2215 = pneg %p2214
      $region68: #{position_embedding_random_forward.1} parent=5 // pred_check_branch
        %2217 = sbr.rel (%p2215) target = $region70
      $region69: #{position_embedding_random_forward.1} parent=5 // pred_region
        %s2218 = ssub.s32 %s8, 2
        // Predicated region
        $region71: #{position_embedding_random_forward.1} parent=69 // pred_check
          %p2219 = pneg %p84
        $region72: #{position_embedding_random_forward.1} parent=69 // pred_check_branch
          %2221 = sbr.rel (%p2219) target = $region74
        $region73: #{position_embedding_random_forward.1} parent=69 // pred_region
          %s2222 = sand.u32 %s69, 1
          %s2223 = sand.u32 %s69, 1
          %s2224 = smul.addr %s2223, 128
          %s2225 = scalar_lea.vmem [#allocation2], %s2224
        $region74: #{position_embedding_random_forward.1} parent=69 // pred_fallthru
          _
      $region70: #{position_embedding_random_forward.1} parent=5 // pred_fallthru
        _
    $region6: #{position_embedding_random_forward.1} parent=1 // loop_footer
      %s12 = sadd.s32 1, %s8
    $region7: #{position_embedding_random_forward.1} parent=1 // loop_footer_branch
      %7 = sbr.rel target = $region3
    $region8: #{position_embedding_random_forward.1} parent=1 // loop_exit
      _

</llo_original>
